<compile_context>
chip_gen: v7x
topology: tpu7x:2x2x1
jax: 0.10.0
libtpu: 0.0.40
codegen_flags: <defaults>
</compile_context>

<pallas_src>
import jax
import jax.numpy as jnp
from jax import lax
from jax.experimental import pallas as pl
from jax.experimental.pallas import tpu as pltpu


# ----------------------------- kernel ----------------------------------------


def _conv_bn_elu_pool(h, w_ref, s_ref, t_ref):
    """One ConvBlock + MaxPool(1,2), time-major.

    h     : (W, Cin)  f32 value (time on sublanes, channels on lanes)
    w_ref : (S*Cin, Cout) bf16, row index = k*Cin + cin (tap-major im2col layout)
    s_ref : (1, Cout) f32 folded BN scale
    t_ref : (1, Cout) f32 folded BN shift (+ folded conv bias for the front layer)
    returns (L//2, Cout) f32 pooled activation, L = W - S + 1.
    """
    W, Cin = h.shape
    SCin, Cout = w_ref.shape
    S = SCin // Cin
    L = W - S + 1

    # im2col: one lane-dense (L, S*Cin) patch matrix -> a single MXU matmul.
    patches = jnp.concatenate([h[k:k + L, :] for k in range(S)], axis=1)
    y = jnp.dot(patches.astype(jnp.bfloat16), w_ref[...],
                preferred_element_type=jnp.float32)              # (L, Cout) f32

    # folded BatchNorm (eval) + ELU(alpha=1)
    y = y * s_ref[...] + t_ref[...]
    y = jnp.where(y > 0, y, jnp.exp(jnp.minimum(y, 0.0)) - 1.0)

    # MaxPool2d((1, 2)) along time: pooled[i] = max(y[2i], y[2i+1]).
    # adjacent max, then stride-2 row selection via a 0/1 matmul (MXU is idle
    # here, and this avoids strided loads / in-kernel reshapes entirely).
    Lp = L // 2
    m = jnp.maximum(y[:L - 1, :], y[1:L, :])                     # (L-1, Cout)
    r = lax.broadcasted_iota(jnp.int32, (Lp, L - 1), 0)
    c = lax.broadcasted_iota(jnp.int32, (Lp, L - 1), 1)
    sel = (c == 2 * r).astype(jnp.float32)                       # (Lp, L-1)
    return jnp.dot(sel, m, preferred_element_type=jnp.float32)   # (Lp, Cout)


def deepconvnet_kernel(x_ref,
                       w1_ref, s1_ref, t1_ref,
                       w2_ref, s2_ref, t2_ref,
                       w3_ref, s3_ref, t3_ref,
                       w4_ref, s4_ref, t4_ref,
                       wf_ref, bf_ref,
                       o_ref):
    """One grid step = one batch sample; all activations stay in VMEM/vregs."""
    x = x_ref[0]                                                  # (T, C) f32

    # conv(1,25,(1,S)) + ConvBlock(25,25,(C,1)) folded into one im2col matmul.
    h = _conv_bn_elu_pool(x, w1_ref, s1_ref, t1_ref)
    h = _conv_bn_elu_pool(h, w2_ref, s2_ref, t2_ref)
    h = _conv_bn_elu_pool(h, w3_ref, s3_ref, t3_ref)
    h = _conv_bn_elu_pool(h, w4_ref, s4_ref, t4_ref)              # (len_, 200)

    # Flatten in (t, ch) order (fc weight was re-ordered to match) + Linear.
    len_ = h.shape[0]
    hrow = jnp.concatenate([h[t:t + 1, :] for t in range(len_)], axis=1)
    out = jnp.dot(hrow.astype(jnp.bfloat16), wf_ref[...],
                  preferred_element_type=jnp.float32) + bf_ref[...]
    o_ref[0] = out                                                # (1, N)


# ----------------------------- wrapper ----------------------------------------


def deepconvnet_forward(x_nchw, params):
    """x_nchw: (B, 1, C, T) float32 -> (B, N) float32."""
    B, _, C, T = x_nchw.shape
    N = params["bf"].shape[1]

    # squeeze singleton input channel and go time-major: (B, T, C)
    xt = jnp.transpose(x_nchw[:, 0, :, :], (0, 2, 1)).astype(jnp.float32)

    weights = [params["w1"], params["s1"], params["t1"],
               params["w2"], params["s2"], params["t2"],
               params["w3"], params["s3"], params["t3"],
               params["w4"], params["s4"], params["t4"],
               params["wf"], params["bf"]]

    def const_spec(a):
        zeros = (0,) * a.ndim
        return pl.BlockSpec(a.shape, lambda b, z=zeros: z)   # resident; DMA'd once

    in_specs = ([pl.BlockSpec((1, T, C), lambda b: (b, 0, 0))]
                + [const_spec(w) for w in weights])
    out_specs = pl.BlockSpec((1, 1, N), lambda b: (b, 0, 0))

    out = pl.pallas_call(
        deepconvnet_kernel,
        out_shape=jax.ShapeDtypeStruct((B, 1, N), jnp.float32),
        grid=(B,),
        in_specs=in_specs,
        out_specs=out_specs,
        compiler_params=pltpu.CompilerParams(
            dimension_semantics=("parallel",)),   # shards batch across v7x's 2 TCs
    )(xt, *weights)
    return out[:, 0, :]


# ----------------------------- parameters -------------------------------------


def fold_bn(gamma, beta, mean, var, eps=1e-5):
    scale = gamma / jnp.sqrt(var + eps)
    shift = beta - mean * scale
    return scale, shift


def init_torch_like_params(key, C, size, N, len_):
    """Random parameters in PyTorch layouts (deterministic)."""
    S = size
    keys = iter(jax.random.split(key, 32))

    def nrm(shape, s=0.1):
        return (s * jax.random.normal(next(keys), shape)).astype(jnp.float32)

    def bn(ch):
        gamma = 0.5 + jax.random.uniform(next(keys), (ch,), dtype=jnp.float32)
        beta = nrm((ch,))
        mean = nrm((ch,))
        var = 0.5 + jax.random.uniform(next(keys), (ch,), dtype=jnp.float32)
        return gamma, beta, mean, var

    return {
        "conv_w": nrm((25, 1, 1, S)), "conv_b": nrm((25,)),
        "b0_w": nrm((25, 25, C, 1)), "bn1": bn(25),
        "b2_w": nrm((50, 25, 1, S)), "bn2": bn(50),
        "b4_w": nrm((100, 50, 1, S)), "bn3": bn(100),
        "b6_w": nrm((200, 100, 1, S)), "bn4": bn(200),
        "fc_w": nrm((N, len_ * 200)), "fc_b": nrm((N,)),
    }


def prepare_params(tp, C, size, N, len_):
    """Fold conv1+spatial-conv+bias+BN, re-layout weights for the kernel (bf16)."""
    S = size
    p = {}

    # --- fused front: conv(1,25,(1,S)) [w1,b1] ∘ Conv2d(25,25,(C,1)) [w2] + BN1 ---
    w1 = tp["conv_w"][:, 0, 0, :]                       # (25, S)
    b1 = tp["conv_b"]                                   # (25,)
    w2 = tp["b0_w"][:, :, :, 0]                         # (25out, 25mid, C)
    w_eff = jnp.einsum("omc,mk->kco", w2, w1)           # (S, C, 25): row k*C + c
    bias_eff = jnp.einsum("omc,m->o", w2, b1)           # (25,)
    sc, sh = fold_bn(*tp["bn1"])
    p["w1"] = w_eff.reshape(S * C, 25).astype(jnp.bfloat16)
    p["s1"] = sc.reshape(1, 25).astype(jnp.float32)
    p["t1"] = (sh + sc * bias_eff).reshape(1, 25).astype(jnp.float32)

    def temporal(wt, bn_stats):
        Cout, Cin, _, S_ = wt.shape
        w = jnp.transpose(wt[:, :, 0, :], (2, 1, 0)).reshape(S_ * Cin, Cout)
        s, t = fold_bn(*bn_stats)
        return (w.astype(jnp.bfloat16),
                s.reshape(1, Cout).astype(jnp.float32),
                t.reshape(1, Cout).astype(jnp.float32))

    p["w2"], p["s2"], p["t2"] = temporal(tp["b2_w"], tp["bn2"])
    p["w3"], p["s3"], p["t3"] = temporal(tp["b4_w"], tp["bn3"])
    p["w4"], p["s4"], p["t4"] = temporal(tp["b6_w"], tp["bn4"])

    # --- fc: torch flatten order is (ch, t); kernel flattens (t, ch) -> permute ---
    wf = tp["fc_w"].reshape(N, 200, len_)
    p["wf"] = jnp.transpose(wf, (2, 1, 0)).reshape(len_ * 200, N).astype(jnp.bfloat16)
    p["bf"] = tp["fc_b"].reshape(1, N).astype(jnp.float32)
    return p


# ----------------------------- main --------------------------------------------

if __name__ == "__main__":
    # Small shapes consistent with the module:
    #   C (electrodes) = 4, T (time) = 64, size = 2, N (classes) = 4, B = 2
    B, C, T, size, N = 2, 4, 64, 2, 4
    a = size - 1
    len_ = ((((T - a) // 2 - a) // 2 - a) // 2 - a) // 2   # = 3

    key = jax.random.PRNGKey(0)
    kx, kp = jax.random.split(key)
    x = jax.random.normal(kx, (B, 1, C, T), dtype=jnp.float32)

    torch_params = init_torch_like_params(kp, C, size, N, len_)
    params = prepare_params(torch_params, C, size, N, len_)

    out = jax.jit(deepconvnet_forward)(x, params)
    out = jax.block_until_ready(out)
    assert out.shape == (B, N), out.shape
    print("KERNEL_OK")
</pallas_src>

<mosaic_0001>
module attributes {stable_mosaic.version = 11 : i64} {
  func.func @deepconvnet_kernel(%arg0: i32, %arg1: memref<1x64x4xf32, #tpu.memory_space<vmem>>, %arg2: memref<8x25xbf16, #tpu.memory_space<vmem>>, %arg3: memref<1x25xf32, #tpu.memory_space<vmem>>, %arg4: memref<1x25xf32, #tpu.memory_space<vmem>>, %arg5: memref<50x50xbf16, #tpu.memory_space<vmem>>, %arg6: memref<1x50xf32, #tpu.memory_space<vmem>>, %arg7: memref<1x50xf32, #tpu.memory_space<vmem>>, %arg8: memref<100x100xbf16, #tpu.memory_space<vmem>>, %arg9: memref<1x100xf32, #tpu.memory_space<vmem>>, %arg10: memref<1x100xf32, #tpu.memory_space<vmem>>, %arg11: memref<200x200xbf16, #tpu.memory_space<vmem>>, %arg12: memref<1x200xf32, #tpu.memory_space<vmem>>, %arg13: memref<1x200xf32, #tpu.memory_space<vmem>>, %arg14: memref<600x4xbf16, #tpu.memory_space<vmem>>, %arg15: memref<1x4xf32, #tpu.memory_space<vmem>>, %arg16: memref<1x1x4xf32, #tpu.memory_space<vmem>>) attributes {dimension_semantics = [#tpu.dimension_semantics<parallel>], iteration_bounds = array<i64: 2>, scalar_prefetch = 0 : i64, scratch_operands = 0 : i64, tpu.core_type = #tpu.core_type<tc>, window_params = [{transform_indices = @transform_0, window_bounds = array<i64: 1, 64, 4>}, {pipeline_mode = #tpu.pipeline_mode<synchronous>, transform_indices = @transform_1, window_bounds = array<i64: 8, 25>}, {pipeline_mode = #tpu.pipeline_mode<synchronous>, transform_indices = @transform_2, window_bounds = array<i64: 1, 25>}, {pipeline_mode = #tpu.pipeline_mode<synchronous>, transform_indices = @transform_3, window_bounds = array<i64: 1, 25>}, {pipeline_mode = #tpu.pipeline_mode<synchronous>, transform_indices = @transform_4, window_bounds = array<i64: 50, 50>}, {pipeline_mode = #tpu.pipeline_mode<synchronous>, transform_indices = @transform_5, window_bounds = array<i64: 1, 50>}, {pipeline_mode = #tpu.pipeline_mode<synchronous>, transform_indices = @transform_6, window_bounds = array<i64: 1, 50>}, {pipeline_mode = #tpu.pipeline_mode<synchronous>, transform_indices = @transform_7, window_bounds = array<i64: 100, 100>}, {pipeline_mode = #tpu.pipeline_mode<synchronous>, transform_indices = @transform_8, window_bounds = array<i64: 1, 100>}, {pipeline_mode = #tpu.pipeline_mode<synchronous>, transform_indices = @transform_9, window_bounds = array<i64: 1, 100>}, {pipeline_mode = #tpu.pipeline_mode<synchronous>, transform_indices = @transform_10, window_bounds = array<i64: 200, 200>}, {pipeline_mode = #tpu.pipeline_mode<synchronous>, transform_indices = @transform_11, window_bounds = array<i64: 1, 200>}, {pipeline_mode = #tpu.pipeline_mode<synchronous>, transform_indices = @transform_12, window_bounds = array<i64: 1, 200>}, {pipeline_mode = #tpu.pipeline_mode<synchronous>, transform_indices = @transform_13, window_bounds = array<i64: 600, 4>}, {pipeline_mode = #tpu.pipeline_mode<synchronous>, transform_indices = @transform_14, window_bounds = array<i64: 1, 4>}, {transform_indices = @transform_15, window_bounds = array<i64: 1, 1, 4>}]} {
    %c0 = arith.constant 0 : index
    %c0_0 = arith.constant 0 : index
    %c0_1 = arith.constant 0 : index
    %0 = vector.load %arg1[%c0, %c0_0, %c0_1] : memref<1x64x4xf32, #tpu.memory_space<vmem>>, vector<1x64x4xf32>
    %1 = vector.shape_cast %0 : vector<1x64x4xf32> to vector<64x4xf32>
    %2 = vector.extract_strided_slice %1 {offsets = [0, 0], sizes = [63, 4], strides = [1, 1]} : vector<64x4xf32> to vector<63x4xf32>
    %3 = vector.extract_strided_slice %1 {offsets = [1, 0], sizes = [63, 4], strides = [1, 1]} : vector<64x4xf32> to vector<63x4xf32>
    %4 = tpu.concatenate %2, %3 in 1 : vector<63x4xf32>, vector<63x4xf32> -> vector<63x8xf32>
    %5 = arith.truncf %4 : vector<63x8xf32> to vector<63x8xbf16>
    %c0_2 = arith.constant 0 : index
    %c0_3 = arith.constant 0 : index
    %6 = vector.load %arg2[%c0_2, %c0_3] : memref<8x25xbf16, #tpu.memory_space<vmem>>, vector<8x25xbf16>
    %cst = arith.constant dense<0.000000e+00> : vector<63x25xf32>
    %7 = tpu.matmul %5, %6, %cst {dimension_numbers = #tpu.dot_dimension_numbers<[1], [0], [0], [1], [0, 0, 1, 1], [], []>} : vector<63x8xbf16>, vector<8x25xbf16>, vector<63x25xf32> -> vector<63x25xf32>
    %c0_4 = arith.constant 0 : index
    %c0_5 = arith.constant 0 : index
    %8 = vector.load %arg3[%c0_4, %c0_5] : memref<1x25xf32, #tpu.memory_space<vmem>>, vector<1x25xf32>
    %9 = vector.broadcast %8 : vector<1x25xf32> to vector<63x25xf32>
    %10 = arith.mulf %7, %9 : vector<63x25xf32>
    %c0_6 = arith.constant 0 : index
    %c0_7 = arith.constant 0 : index
    %11 = vector.load %arg4[%c0_6, %c0_7] : memref<1x25xf32, #tpu.memory_space<vmem>>, vector<1x25xf32>
    %12 = vector.broadcast %11 : vector<1x25xf32> to vector<63x25xf32>
    %13 = arith.addf %10, %12 : vector<63x25xf32>
    %cst_8 = arith.constant 0.000000e+00 : f32
    %14 = vector.broadcast %cst_8 : f32 to vector<63x25xf32>
    %15 = arith.cmpf ogt, %13, %14 : vector<63x25xf32>
    %cst_9 = arith.constant 0.000000e+00 : f32
    %16 = vector.broadcast %cst_9 : f32 to vector<63x25xf32>
    %17 = arith.minimumf %13, %16 : vector<63x25xf32>
    %18 = math.exp %17 : vector<63x25xf32>
    %cst_10 = arith.constant 1.000000e+00 : f32
    %19 = vector.broadcast %cst_10 : f32 to vector<63x25xf32>
    %20 = arith.subf %18, %19 : vector<63x25xf32>
    %21 = arith.select %15, %13, %20 : vector<63x25xi1>, vector<63x25xf32>
    %22 = vector.extract_strided_slice %21 {offsets = [0, 0], sizes = [62, 25], strides = [1, 1]} : vector<63x25xf32> to vector<62x25xf32>
    %23 = vector.extract_strided_slice %21 {offsets = [1, 0], sizes = [62, 25], strides = [1, 1]} : vector<63x25xf32> to vector<62x25xf32>
    %24 = arith.maximumf %22, %23 : vector<62x25xf32>
    %25 = tpu.iota {dimensions = array<i32: 0>} : vector<31x62xi32>
    %26 = tpu.iota {dimensions = array<i32: 1>} : vector<31x62xi32>
    %c2_i32 = arith.constant 2 : i32
    %27 = vector.broadcast %c2_i32 : i32 to vector<31x62xi32>
    %28 = arith.muli %27, %25 : vector<31x62xi32>
    %29 = arith.cmpi eq, %26, %28 : vector<31x62xi32>
    %30 = arith.extui %29 : vector<31x62xi1> to vector<31x62xi32>
    %31 = arith.sitofp %30 : vector<31x62xi32> to vector<31x62xf32>
    %cst_11 = arith.constant dense<0.000000e+00> : vector<31x25xf32>
    %32 = tpu.matmul %31, %24, %cst_11 {dimension_numbers = #tpu.dot_dimension_numbers<[1], [0], [0], [1], [0, 0, 1, 1], [], []>} : vector<31x62xf32>, vector<62x25xf32>, vector<31x25xf32> -> vector<31x25xf32>
    %33 = vector.extract_strided_slice %32 {offsets = [0, 0], sizes = [30, 25], strides = [1, 1]} : vector<31x25xf32> to vector<30x25xf32>
    %34 = vector.extract_strided_slice %32 {offsets = [1, 0], sizes = [30, 25], strides = [1, 1]} : vector<31x25xf32> to vector<30x25xf32>
    %35 = tpu.concatenate %33, %34 in 1 : vector<30x25xf32>, vector<30x25xf32> -> vector<30x50xf32>
    %36 = arith.truncf %35 : vector<30x50xf32> to vector<30x50xbf16>
    %c0_12 = arith.constant 0 : index
    %c0_13 = arith.constant 0 : index
    %37 = vector.load %arg5[%c0_12, %c0_13] : memref<50x50xbf16, #tpu.memory_space<vmem>>, vector<50x50xbf16>
    %cst_14 = arith.constant dense<0.000000e+00> : vector<30x50xf32>
    %38 = tpu.matmul %36, %37, %cst_14 {dimension_numbers = #tpu.dot_dimension_numbers<[1], [0], [0], [1], [0, 0, 1, 1], [], []>} : vector<30x50xbf16>, vector<50x50xbf16>, vector<30x50xf32> -> vector<30x50xf32>
    %c0_15 = arith.constant 0 : index
    %c0_16 = arith.constant 0 : index
    %39 = vector.load %arg6[%c0_15, %c0_16] : memref<1x50xf32, #tpu.memory_space<vmem>>, vector<1x50xf32>
    %40 = vector.broadcast %39 : vector<1x50xf32> to vector<30x50xf32>
    %41 = arith.mulf %38, %40 : vector<30x50xf32>
    %c0_17 = arith.constant 0 : index
    %c0_18 = arith.constant 0 : index
    %42 = vector.load %arg7[%c0_17, %c0_18] : memref<1x50xf32, #tpu.memory_space<vmem>>, vector<1x50xf32>
    %43 = vector.broadcast %42 : vector<1x50xf32> to vector<30x50xf32>
    %44 = arith.addf %41, %43 : vector<30x50xf32>
    %cst_19 = arith.constant 0.000000e+00 : f32
    %45 = vector.broadcast %cst_19 : f32 to vector<30x50xf32>
    %46 = arith.cmpf ogt, %44, %45 : vector<30x50xf32>
    %cst_20 = arith.constant 0.000000e+00 : f32
    %47 = vector.broadcast %cst_20 : f32 to vector<30x50xf32>
    %48 = arith.minimumf %44, %47 : vector<30x50xf32>
    %49 = math.exp %48 : vector<30x50xf32>
    %cst_21 = arith.constant 1.000000e+00 : f32
    %50 = vector.broadcast %cst_21 : f32 to vector<30x50xf32>
    %51 = arith.subf %49, %50 : vector<30x50xf32>
    %52 = arith.select %46, %44, %51 : vector<30x50xi1>, vector<30x50xf32>
    %53 = vector.extract_strided_slice %52 {offsets = [0, 0], sizes = [29, 50], strides = [1, 1]} : vector<30x50xf32> to vector<29x50xf32>
    %54 = vector.extract_strided_slice %52 {offsets = [1, 0], sizes = [29, 50], strides = [1, 1]} : vector<30x50xf32> to vector<29x50xf32>
    %55 = arith.maximumf %53, %54 : vector<29x50xf32>
    %56 = tpu.iota {dimensions = array<i32: 0>} : vector<15x29xi32>
    %57 = tpu.iota {dimensions = array<i32: 1>} : vector<15x29xi32>
    %c2_i32_22 = arith.constant 2 : i32
    %58 = vector.broadcast %c2_i32_22 : i32 to vector<15x29xi32>
    %59 = arith.muli %58, %56 : vector<15x29xi32>
    %60 = arith.cmpi eq, %57, %59 : vector<15x29xi32>
    %61 = arith.extui %60 : vector<15x29xi1> to vector<15x29xi32>
    %62 = arith.sitofp %61 : vector<15x29xi32> to vector<15x29xf32>
    %cst_23 = arith.constant dense<0.000000e+00> : vector<15x50xf32>
    %63 = tpu.matmul %62, %55, %cst_23 {dimension_numbers = #tpu.dot_dimension_numbers<[1], [0], [0], [1], [0, 0, 1, 1], [], []>} : vector<15x29xf32>, vector<29x50xf32>, vector<15x50xf32> -> vector<15x50xf32>
    %64 = vector.extract_strided_slice %63 {offsets = [0, 0], sizes = [14, 50], strides = [1, 1]} : vector<15x50xf32> to vector<14x50xf32>
    %65 = vector.extract_strided_slice %63 {offsets = [1, 0], sizes = [14, 50], strides = [1, 1]} : vector<15x50xf32> to vector<14x50xf32>
    %66 = tpu.concatenate %64, %65 in 1 : vector<14x50xf32>, vector<14x50xf32> -> vector<14x100xf32>
    %67 = arith.truncf %66 : vector<14x100xf32> to vector<14x100xbf16>
    %c0_24 = arith.constant 0 : index
    %c0_25 = arith.constant 0 : index
    %68 = vector.load %arg8[%c0_24, %c0_25] : memref<100x100xbf16, #tpu.memory_space<vmem>>, vector<100x100xbf16>
    %cst_26 = arith.constant dense<0.000000e+00> : vector<14x100xf32>
    %69 = tpu.matmul %67, %68, %cst_26 {dimension_numbers = #tpu.dot_dimension_numbers<[1], [0], [0], [1], [0, 0, 1, 1], [], []>} : vector<14x100xbf16>, vector<100x100xbf16>, vector<14x100xf32> -> vector<14x100xf32>
    %c0_27 = arith.constant 0 : index
    %c0_28 = arith.constant 0 : index
    %70 = vector.load %arg9[%c0_27, %c0_28] : memref<1x100xf32, #tpu.memory_space<vmem>>, vector<1x100xf32>
    %71 = vector.broadcast %70 : vector<1x100xf32> to vector<14x100xf32>
    %72 = arith.mulf %69, %71 : vector<14x100xf32>
    %c0_29 = arith.constant 0 : index
    %c0_30 = arith.constant 0 : index
    %73 = vector.load %arg10[%c0_29, %c0_30] : memref<1x100xf32, #tpu.memory_space<vmem>>, vector<1x100xf32>
    %74 = vector.broadcast %73 : vector<1x100xf32> to vector<14x100xf32>
    %75 = arith.addf %72, %74 : vector<14x100xf32>
    %cst_31 = arith.constant 0.000000e+00 : f32
    %76 = vector.broadcast %cst_31 : f32 to vector<14x100xf32>
    %77 = arith.cmpf ogt, %75, %76 : vector<14x100xf32>
    %cst_32 = arith.constant 0.000000e+00 : f32
    %78 = vector.broadcast %cst_32 : f32 to vector<14x100xf32>
    %79 = arith.minimumf %75, %78 : vector<14x100xf32>
    %80 = math.exp %79 : vector<14x100xf32>
    %cst_33 = arith.constant 1.000000e+00 : f32
    %81 = vector.broadcast %cst_33 : f32 to vector<14x100xf32>
    %82 = arith.subf %80, %81 : vector<14x100xf32>
    %83 = arith.select %77, %75, %82 : vector<14x100xi1>, vector<14x100xf32>
    %84 = vector.extract_strided_slice %83 {offsets = [0, 0], sizes = [13, 100], strides = [1, 1]} : vector<14x100xf32> to vector<13x100xf32>
    %85 = vector.extract_strided_slice %83 {offsets = [1, 0], sizes = [13, 100], strides = [1, 1]} : vector<14x100xf32> to vector<13x100xf32>
    %86 = arith.maximumf %84, %85 : vector<13x100xf32>
    %87 = tpu.iota {dimensions = array<i32: 0>} : vector<7x13xi32>
    %88 = tpu.iota {dimensions = array<i32: 1>} : vector<7x13xi32>
    %c2_i32_34 = arith.constant 2 : i32
    %89 = vector.broadcast %c2_i32_34 : i32 to vector<7x13xi32>
    %90 = arith.muli %89, %87 : vector<7x13xi32>
    %91 = arith.cmpi eq, %88, %90 : vector<7x13xi32>
    %92 = arith.extui %91 : vector<7x13xi1> to vector<7x13xi32>
    %93 = arith.sitofp %92 : vector<7x13xi32> to vector<7x13xf32>
    %cst_35 = arith.constant dense<0.000000e+00> : vector<7x100xf32>
    %94 = tpu.matmul %93, %86, %cst_35 {dimension_numbers = #tpu.dot_dimension_numbers<[1], [0], [0], [1], [0, 0, 1, 1], [], []>} : vector<7x13xf32>, vector<13x100xf32>, vector<7x100xf32> -> vector<7x100xf32>
    %95 = vector.extract_strided_slice %94 {offsets = [0, 0], sizes = [6, 100], strides = [1, 1]} : vector<7x100xf32> to vector<6x100xf32>
    %96 = vector.extract_strided_slice %94 {offsets = [1, 0], sizes = [6, 100], strides = [1, 1]} : vector<7x100xf32> to vector<6x100xf32>
    %97 = tpu.concatenate %95, %96 in 1 : vector<6x100xf32>, vector<6x100xf32> -> vector<6x200xf32>
    %98 = arith.truncf %97 : vector<6x200xf32> to vector<6x200xbf16>
    %c0_36 = arith.constant 0 : index
    %c0_37 = arith.constant 0 : index
    %99 = vector.load %arg11[%c0_36, %c0_37] : memref<200x200xbf16, #tpu.memory_space<vmem>>, vector<200x200xbf16>
    %cst_38 = arith.constant dense<0.000000e+00> : vector<6x200xf32>
    %100 = tpu.matmul %98, %99, %cst_38 {dimension_numbers = #tpu.dot_dimension_numbers<[1], [0], [0], [1], [0, 0, 1, 1], [], []>} : vector<6x200xbf16>, vector<200x200xbf16>, vector<6x200xf32> -> vector<6x200xf32>
    %c0_39 = arith.constant 0 : index
    %c0_40 = arith.constant 0 : index
    %101 = vector.load %arg12[%c0_39, %c0_40] : memref<1x200xf32, #tpu.memory_space<vmem>>, vector<1x200xf32>
    %102 = vector.broadcast %101 : vector<1x200xf32> to vector<6x200xf32>
    %103 = arith.mulf %100, %102 : vector<6x200xf32>
    %c0_41 = arith.constant 0 : index
    %c0_42 = arith.constant 0 : index
    %104 = vector.load %arg13[%c0_41, %c0_42] : memref<1x200xf32, #tpu.memory_space<vmem>>, vector<1x200xf32>
    %105 = vector.broadcast %104 : vector<1x200xf32> to vector<6x200xf32>
    %106 = arith.addf %103, %105 : vector<6x200xf32>
    %cst_43 = arith.constant 0.000000e+00 : f32
    %107 = vector.broadcast %cst_43 : f32 to vector<6x200xf32>
    %108 = arith.cmpf ogt, %106, %107 : vector<6x200xf32>
    %cst_44 = arith.constant 0.000000e+00 : f32
    %109 = vector.broadcast %cst_44 : f32 to vector<6x200xf32>
    %110 = arith.minimumf %106, %109 : vector<6x200xf32>
    %111 = math.exp %110 : vector<6x200xf32>
    %cst_45 = arith.constant 1.000000e+00 : f32
    %112 = vector.broadcast %cst_45 : f32 to vector<6x200xf32>
    %113 = arith.subf %111, %112 : vector<6x200xf32>
    %114 = arith.select %108, %106, %113 : vector<6x200xi1>, vector<6x200xf32>
    %115 = vector.extract_strided_slice %114 {offsets = [0, 0], sizes = [5, 200], strides = [1, 1]} : vector<6x200xf32> to vector<5x200xf32>
    %116 = vector.extract_strided_slice %114 {offsets = [1, 0], sizes = [5, 200], strides = [1, 1]} : vector<6x200xf32> to vector<5x200xf32>
    %117 = arith.maximumf %115, %116 : vector<5x200xf32>
    %118 = tpu.iota {dimensions = array<i32: 0>} : vector<3x5xi32>
    %119 = tpu.iota {dimensions = array<i32: 1>} : vector<3x5xi32>
    %c2_i32_46 = arith.constant 2 : i32
    %120 = vector.broadcast %c2_i32_46 : i32 to vector<3x5xi32>
    %121 = arith.muli %120, %118 : vector<3x5xi32>
    %122 = arith.cmpi eq, %119, %121 : vector<3x5xi32>
    %123 = arith.extui %122 : vector<3x5xi1> to vector<3x5xi32>
    %124 = arith.sitofp %123 : vector<3x5xi32> to vector<3x5xf32>
    %cst_47 = arith.constant dense<0.000000e+00> : vector<3x200xf32>
    %125 = tpu.matmul %124, %117, %cst_47 {dimension_numbers = #tpu.dot_dimension_numbers<[1], [0], [0], [1], [0, 0, 1, 1], [], []>} : vector<3x5xf32>, vector<5x200xf32>, vector<3x200xf32> -> vector<3x200xf32>
    %126 = vector.extract_strided_slice %125 {offsets = [0, 0], sizes = [1, 200], strides = [1, 1]} : vector<3x200xf32> to vector<1x200xf32>
    %127 = vector.extract_strided_slice %125 {offsets = [1, 0], sizes = [1, 200], strides = [1, 1]} : vector<3x200xf32> to vector<1x200xf32>
    %128 = vector.extract_strided_slice %125 {offsets = [2, 0], sizes = [1, 200], strides = [1, 1]} : vector<3x200xf32> to vector<1x200xf32>
    %129 = tpu.concatenate %126, %127, %128 in 1 : vector<1x200xf32>, vector<1x200xf32>, vector<1x200xf32> -> vector<1x600xf32>
    %130 = arith.truncf %129 : vector<1x600xf32> to vector<1x600xbf16>
    %c0_48 = arith.constant 0 : index
    %c0_49 = arith.constant 0 : index
    %131 = vector.load %arg14[%c0_48, %c0_49] : memref<600x4xbf16, #tpu.memory_space<vmem>>, vector<600x4xbf16>
    %cst_50 = arith.constant dense<0.000000e+00> : vector<1x4xf32>
    %132 = tpu.matmul %130, %131, %cst_50 {dimension_numbers = #tpu.dot_dimension_numbers<[1], [0], [0], [1], [0, 0, 1, 1], [], []>} : vector<1x600xbf16>, vector<600x4xbf16>, vector<1x4xf32> -> vector<1x4xf32>
    %c0_51 = arith.constant 0 : index
    %c0_52 = arith.constant 0 : index
    %133 = vector.load %arg15[%c0_51, %c0_52] : memref<1x4xf32, #tpu.memory_space<vmem>>, vector<1x4xf32>
    %134 = arith.addf %132, %133 : vector<1x4xf32>
    %c0_53 = arith.constant 0 : index
    %c0_54 = arith.constant 0 : index
    %c0_55 = arith.constant 0 : index
    %135 = vector.load %arg16[%c0_53, %c0_54, %c0_55] : memref<1x1x4xf32, #tpu.memory_space<vmem>>, vector<1x1x4xf32>
    %136 = vector.shape_cast %135 : vector<1x1x4xf32> to vector<1x4xf32>
    %137 = vector.shape_cast %134 : vector<1x4xf32> to vector<1x1x4xf32>
    tpu.vector_store %arg16[%c0_53, %c0_54, %c0_55], %137 {strides = array<i32>} : memref<1x1x4xf32, #tpu.memory_space<vmem>>, vector<1x1x4xf32>,
    return
  }
  func.func @transform_0(%arg0: i32) -> (i32, i32, i32) {
    %c0_i32 = arith.constant 0 : i32
    %c0_i32_0 = arith.constant 0 : i32
    %c0_i32_1 = arith.constant 0 : i32
    return %arg0, %c0_i32, %c0_i32_0 : i32, i32, i32
  }
  func.func @transform_1(%arg0: i32) -> (i32, i32) {
    %c0_i32 = arith.constant 0 : i32
    %c0_i32_0 = arith.constant 0 : i32
    %c0_i32_1 = arith.constant 0 : i32
    return %c0_i32, %c0_i32_0 : i32, i32
  }
  func.func @transform_2(%arg0: i32) -> (i32, i32) {
    %c0_i32 = arith.constant 0 : i32
    %c0_i32_0 = arith.constant 0 : i32
    %c0_i32_1 = arith.constant 0 : i32
    return %c0_i32, %c0_i32_0 : i32, i32
  }
  func.func @transform_3(%arg0: i32) -> (i32, i32) {
    %c0_i32 = arith.constant 0 : i32
    %c0_i32_0 = arith.constant 0 : i32
    %c0_i32_1 = arith.constant 0 : i32
    return %c0_i32, %c0_i32_0 : i32, i32
  }
  func.func @transform_4(%arg0: i32) -> (i32, i32) {
    %c0_i32 = arith.constant 0 : i32
    %c0_i32_0 = arith.constant 0 : i32
    %c0_i32_1 = arith.constant 0 : i32
    return %c0_i32, %c0_i32_0 : i32, i32
  }
  func.func @transform_5(%arg0: i32) -> (i32, i32) {
    %c0_i32 = arith.constant 0 : i32
    %c0_i32_0 = arith.constant 0 : i32
    %c0_i32_1 = arith.constant 0 : i32
    return %c0_i32, %c0_i32_0 : i32, i32
  }
  func.func @transform_6(%arg0: i32) -> (i32, i32) {
    %c0_i32 = arith.constant 0 : i32
    %c0_i32_0 = arith.constant 0 : i32
    %c0_i32_1 = arith.constant 0 : i32
    return %c0_i32, %c0_i32_0 : i32, i32
  }
  func.func @transform_7(%arg0: i32) -> (i32, i32) {
    %c0_i32 = arith.constant 0 : i32
    %c0_i32_0 = arith.constant 0 : i32
    %c0_i32_1 = arith.constant 0 : i32
    return %c0_i32, %c0_i32_0 : i32, i32
  }
  func.func @transform_8(%arg0: i32) -> (i32, i32) {
    %c0_i32 = arith.constant 0 : i32
    %c0_i32_0 = arith.constant 0 : i32
    %c0_i32_1 = arith.constant 0 : i32
    return %c0_i32, %c0_i32_0 : i32, i32
  }
  func.func @transform_9(%arg0: i32) -> (i32, i32) {
    %c0_i32 = arith.constant 0 : i32
    %c0_i32_0 = arith.constant 0 : i32
    %c0_i32_1 = arith.constant 0 : i32
    return %c0_i32, %c0_i32_0 : i32, i32
  }
  func.func @transform_10(%arg0: i32) -> (i32, i32) {
    %c0_i32 = arith.constant 0 : i32
    %c0_i32_0 = arith.constant 0 : i32
    %c0_i32_1 = arith.constant 0 : i32
    return %c0_i32, %c0_i32_0 : i32, i32
  }
  func.func @transform_11(%arg0: i32) -> (i32, i32) {
    %c0_i32 = arith.constant 0 : i32
    %c0_i32_0 = arith.constant 0 : i32
    %c0_i32_1 = arith.constant 0 : i32
    return %c0_i32, %c0_i32_0 : i32, i32
  }
  func.func @transform_12(%arg0: i32) -> (i32, i32) {
    %c0_i32 = arith.constant 0 : i32
    %c0_i32_0 = arith.constant 0 : i32
    %c0_i32_1 = arith.constant 0 : i32
    return %c0_i32, %c0_i32_0 : i32, i32
  }
  func.func @transform_13(%arg0: i32) -> (i32, i32) {
    %c0_i32 = arith.constant 0 : i32
    %c0_i32_0 = arith.constant 0 : i32
    %c0_i32_1 = arith.constant 0 : i32
    return %c0_i32, %c0_i32_0 : i32, i32
  }
  func.func @transform_14(%arg0: i32) -> (i32, i32) {
    %c0_i32 = arith.constant 0 : i32
    %c0_i32_0 = arith.constant 0 : i32
    %c0_i32_1 = arith.constant 0 : i32
    return %c0_i32, %c0_i32_0 : i32, i32
  }
  func.func @transform_15(%arg0: i32) -> (i32, i32, i32) {
    %c0_i32 = arith.constant 0 : i32
    %c0_i32_0 = arith.constant 0 : i32
    %c0_i32_1 = arith.constant 0 : i32
    return %arg0, %c0_i32, %c0_i32_0 : i32, i32, i32
  }
}

</mosaic_0001>

<llo_original>
// kernel: deepconvnet_forward.1
$region0: #{deepconvnet_forward.1}
  #allocation0 [shape = 'u32[]', space=smem, size = 0x4, offset = 0x4, fixed_abs, tag = 'smem constant byte address 0x4 - core index']
  #allocation1 [shape = 'u32[144,128]{1,0:T(1,128)}', space=vmem, size = 0x12000, scoped, tag = 'internal scratch']
  %s0 = inlined_call_operand.vmem [shape: f32[2,64,4], index: 0, kind: input, shape index: {}]
  %s1 = inlined_call_operand.vmem [shape: bf16[8,25], index: 1, kind: input, shape index: {}]
  %s2 = inlined_call_operand.vmem [shape: f32[1,25], index: 2, kind: input, shape index: {}]
  %s3 = inlined_call_operand.vmem [shape: f32[1,25], index: 3, kind: input, shape index: {}]
  %s4 = inlined_call_operand.vmem [shape: bf16[50,50], index: 4, kind: input, shape index: {}]
  %s5 = inlined_call_operand.vmem [shape: f32[1,50], index: 5, kind: input, shape index: {}]
  %s6 = inlined_call_operand.vmem [shape: f32[1,50], index: 6, kind: input, shape index: {}]
  %s7 = inlined_call_operand.vmem [shape: bf16[100,100], index: 7, kind: input, shape index: {}]
  %s8 = inlined_call_operand.vmem [shape: f32[1,100], index: 8, kind: input, shape index: {}]
  %s9 = inlined_call_operand.vmem [shape: f32[1,100], index: 9, kind: input, shape index: {}]
  %s10 = inlined_call_operand.vmem [shape: bf16[200,200], index: 10, kind: input, shape index: {}]
  %s11 = inlined_call_operand.vmem [shape: f32[1,200], index: 11, kind: input, shape index: {}]
  %s12 = inlined_call_operand.vmem [shape: f32[1,200], index: 12, kind: input, shape index: {}]
  %s13 = inlined_call_operand.vmem [shape: bf16[600,4], index: 13, kind: input, shape index: {}]
  %s14 = inlined_call_operand.vmem [shape: f32[1,4], index: 14, kind: input, shape index: {}]
  %s15 = inlined_call_operand.hbm [shape: f32[2,1,4], index: 15, kind: output, shape index: {}]
  %s16 = sld [smem:[#allocation0]]
  $region93: #{deepconvnet_forward.1} parent=0
    _
  %s18 = ssub.s32 1, %s16
  %s19 = scalar_select 0, %s18, %s16
  $region1: #{deepconvnet_forward.1} parent=0
    #allocation2 [shape = 'u8[1024]{0}', space=vmem, size = 0x400, scoped, tag = 'output window, operand 0']
    #allocation3 [shape = 's32[2]{0}', space=sflag, size = 0x8, scoped, tag = 'scoped memory for deepconvnet_forward.1']
    %20 = vsyncpa [#allocation3], 0
    %s21 = scalar_lea.sflag [#allocation3], 1
    %22 = vsyncpa %s21, 0
    loop: start=0, step=1, limit=4
    $region2: #{deepconvnet_forward.1} parent=1 // loop_pre_header
      _
    $region3: #{deepconvnet_forward.1} parent=1 // loop_header
      %s24 = sphi 0, %s28
      %p25 = scmp.ge.s32.totalorder %s24, 4
      %s34 = sphi 0, %s36
      %s37 = sphi 0, %s34
      %s38 = sphi 0, %s37
      %s54 = sphi 0, %s38
      %s58 = sphi 0, %s58
      %s60 = sphi 0, %s58
      %s61 = sphi 0, %s60
      %s75 = sphi 0, %s61
      %s79 = sphi 0, %s79
      %s81 = sphi 0, %s79
      %s82 = sphi 0, %s81
      %s96 = sphi 0, %s82
      %s100 = sphi 0, %s100
      %s102 = sphi 0, %s100
      %s103 = sphi 0, %s102
      %s117 = sphi 0, %s103
      %s121 = sphi 0, %s121
      %s123 = sphi 0, %s121
      %s124 = sphi 0, %s123
      %s138 = sphi 0, %s124
      %s142 = sphi 0, %s142
      %s144 = sphi 0, %s142
      %s145 = sphi 0, %s144
      %s159 = sphi 0, %s145
      %s163 = sphi 0, %s163
      %s165 = sphi 0, %s163
      %s166 = sphi 0, %s165
      %s180 = sphi 0, %s166
      %s184 = sphi 0, %s184
      %s186 = sphi 0, %s184
      %s187 = sphi 0, %s186
      %s201 = sphi 0, %s187
      %s205 = sphi 0, %s205
      %s207 = sphi 0, %s205
      %s208 = sphi 0, %s207
      %s222 = sphi 0, %s208
      %s226 = sphi 0, %s226
      %s228 = sphi 0, %s226
      %s229 = sphi 0, %s228
      %s243 = sphi 0, %s229
      %s247 = sphi 0, %s247
      %s249 = sphi 0, %s247
      %s250 = sphi 0, %s249
      %s264 = sphi 0, %s250
      %s268 = sphi 0, %s268
      %s270 = sphi 0, %s268
      %s271 = sphi 0, %s270
      %s285 = sphi 0, %s271
      %s289 = sphi 0, %s289
      %s291 = sphi 0, %s289
      %s292 = sphi 0, %s291
      %s306 = sphi 0, %s292
      %s310 = sphi 0, %s310
      %s312 = sphi 0, %s310
      %s313 = sphi 0, %s312
      %s327 = sphi 0, %s313
      %s331 = sphi 0, %s331
      %s333 = sphi 0, %s331
      %s334 = sphi 0, %s333
      %s348 = sphi 0, %s334
      %s354 = sphi 0, %s356
      %s357 = sphi 0, %s354
      %s358 = sphi 0, %s357
      %s374 = sphi 0, %s358
    $region4: #{deepconvnet_forward.1} parent=1 // loop_header_branch
      %27 = sbr.rel (%p25) target = $region8
    $region5: #{deepconvnet_forward.1} parent=1 // loop_body
      %s29 = ssub.s32 %s24, 1
      %s30 = ssub.s32 %s24, 2
      %s31 = sadd.s32 %s24, 1
      %s32 = ssub.s32 %s24, %s31
      %p33 = scmp.eq.s32.totalorder %s32, 0
      %s35 = sadd.s32 %s34, 1
      %s36 = scalar_select %p33, %s34, %s35
      %p39 = pneg %p33
      %p40 = scmp.eq.s32.totalorder %s24, 1
      %p41 = por %p39, %p40
      %p42 = scmp.ne.s32.totalorder %s34, %s37
      %p43 = scmp.eq.s32.totalorder %s24, 0
      %p44 = por %p42, %p43
      %p45 = scmp.ne.s32.totalorder %s34, %s37
      %p46 = scmp.eq.s32.totalorder %s29, 1
      %p47 = por %p45, %p46
      %p48 = scmp.ne.s32.totalorder %s37, %s38
      %p49 = scmp.eq.s32.totalorder %s29, 0
      %p50 = por %p48, %p49
      %p51 = scmp.ne.s32.totalorder %s37, %s38
      %p52 = scmp.eq.s32.totalorder %s30, 1
      %p53 = por %p51, %p52
      %p55 = scmp.ne.s32.totalorder %s38, %s54
      %p56 = scmp.eq.s32.totalorder %s30, 0
      %p57 = por %p55, %p56
      %s59 = sadd.s32 %s58, 1
      %p62 = scmp.eq.s32.totalorder %s24, 1
      %p63 = scmp.ne.s32.totalorder %s58, %s60
      %p64 = scmp.eq.s32.totalorder %s24, 0
      %p65 = por %p63, %p64
      %p66 = scmp.ne.s32.totalorder %s58, %s60
      %p67 = scmp.eq.s32.totalorder %s29, 1
      %p68 = por %p66, %p67
      %p69 = scmp.ne.s32.totalorder %s60, %s61
      %p70 = scmp.eq.s32.totalorder %s29, 0
      %p71 = por %p69, %p70
      %p72 = scmp.ne.s32.totalorder %s60, %s61
      %p73 = scmp.eq.s32.totalorder %s30, 1
      %p74 = por %p72, %p73
      %p76 = scmp.ne.s32.totalorder %s61, %s75
      %p77 = scmp.eq.s32.totalorder %s30, 0
      %p78 = por %p76, %p77
      %s80 = sadd.s32 %s79, 1
      %p83 = scmp.eq.s32.totalorder %s24, 1
      %p84 = scmp.ne.s32.totalorder %s79, %s81
      %p85 = scmp.eq.s32.totalorder %s24, 0
      %p86 = por %p84, %p85
      %p87 = scmp.ne.s32.totalorder %s79, %s81
      %p88 = scmp.eq.s32.totalorder %s29, 1
      %p89 = por %p87, %p88
      %p90 = scmp.ne.s32.totalorder %s81, %s82
      %p91 = scmp.eq.s32.totalorder %s29, 0
      %p92 = por %p90, %p91
      %p93 = scmp.ne.s32.totalorder %s81, %s82
      %p94 = scmp.eq.s32.totalorder %s30, 1
      %p95 = por %p93, %p94
      %p97 = scmp.ne.s32.totalorder %s82, %s96
      %p98 = scmp.eq.s32.totalorder %s30, 0
      %p99 = por %p97, %p98
      %s101 = sadd.s32 %s100, 1
      %p104 = scmp.eq.s32.totalorder %s24, 1
      %p105 = scmp.ne.s32.totalorder %s100, %s102
      %p106 = scmp.eq.s32.totalorder %s24, 0
      %p107 = por %p105, %p106
      %p108 = scmp.ne.s32.totalorder %s100, %s102
      %p109 = scmp.eq.s32.totalorder %s29, 1
      %p110 = por %p108, %p109
      %p111 = scmp.ne.s32.totalorder %s102, %s103
      %p112 = scmp.eq.s32.totalorder %s29, 0
      %p113 = por %p111, %p112
      %p114 = scmp.ne.s32.totalorder %s102, %s103
      %p115 = scmp.eq.s32.totalorder %s30, 1
      %p116 = por %p114, %p115
      %p118 = scmp.ne.s32.totalorder %s103, %s117
      %p119 = scmp.eq.s32.totalorder %s30, 0
      %p120 = por %p118, %p119
      %s122 = sadd.s32 %s121, 1
      %p125 = scmp.eq.s32.totalorder %s24, 1
      %p126 = scmp.ne.s32.totalorder %s121, %s123
      %p127 = scmp.eq.s32.totalorder %s24, 0
      %p128 = por %p126, %p127
      %p129 = scmp.ne.s32.totalorder %s121, %s123
      %p130 = scmp.eq.s32.totalorder %s29, 1
      %p131 = por %p129, %p130
      %p132 = scmp.ne.s32.totalorder %s123, %s124
      %p133 = scmp.eq.s32.totalorder %s29, 0
      %p134 = por %p132, %p133
      %p135 = scmp.ne.s32.totalorder %s123, %s124
      %p136 = scmp.eq.s32.totalorder %s30, 1
      %p137 = por %p135, %p136
      %p139 = scmp.ne.s32.totalorder %s124, %s138
      %p140 = scmp.eq.s32.totalorder %s30, 0
      %p141 = por %p139, %p140
      %s143 = sadd.s32 %s142, 1
      %p146 = scmp.eq.s32.totalorder %s24, 1
      %p147 = scmp.ne.s32.totalorder %s142, %s144
      %p148 = scmp.eq.s32.totalorder %s24, 0
      %p149 = por %p147, %p148
      %p150 = scmp.ne.s32.totalorder %s142, %s144
      %p151 = scmp.eq.s32.totalorder %s29, 1
      %p152 = por %p150, %p151
      %p153 = scmp.ne.s32.totalorder %s144, %s145
      %p154 = scmp.eq.s32.totalorder %s29, 0
      %p155 = por %p153, %p154
      %p156 = scmp.ne.s32.totalorder %s144, %s145
      %p157 = scmp.eq.s32.totalorder %s30, 1
      %p158 = por %p156, %p157
      %p160 = scmp.ne.s32.totalorder %s145, %s159
      %p161 = scmp.eq.s32.totalorder %s30, 0
      %p162 = por %p160, %p161
      %s164 = sadd.s32 %s163, 1
      %p167 = scmp.eq.s32.totalorder %s24, 1
      %p168 = scmp.ne.s32.totalorder %s163, %s165
      %p169 = scmp.eq.s32.totalorder %s24, 0
      %p170 = por %p168, %p169
      %p171 = scmp.ne.s32.totalorder %s163, %s165
      %p172 = scmp.eq.s32.totalorder %s29, 1
      %p173 = por %p171, %p172
      %p174 = scmp.ne.s32.totalorder %s165, %s166
      %p175 = scmp.eq.s32.totalorder %s29, 0
      %p176 = por %p174, %p175
      %p177 = scmp.ne.s32.totalorder %s165, %s166
      %p178 = scmp.eq.s32.totalorder %s30, 1
      %p179 = por %p177, %p178
      %p181 = scmp.ne.s32.totalorder %s166, %s180
      %p182 = scmp.eq.s32.totalorder %s30, 0
      %p183 = por %p181, %p182
      %s185 = sadd.s32 %s184, 1
      %p188 = scmp.eq.s32.totalorder %s24, 1
      %p189 = scmp.ne.s32.totalorder %s184, %s186
      %p190 = scmp.eq.s32.totalorder %s24, 0
      %p191 = por %p189, %p190
      %p192 = scmp.ne.s32.totalorder %s184, %s186
      %p193 = scmp.eq.s32.totalorder %s29, 1
      %p194 = por %p192, %p193
      %p195 = scmp.ne.s32.totalorder %s186, %s187
      %p196 = scmp.eq.s32.totalorder %s29, 0
      %p197 = por %p195, %p196
      %p198 = scmp.ne.s32.totalorder %s186, %s187
      %p199 = scmp.eq.s32.totalorder %s30, 1
      %p200 = por %p198, %p199
      %p202 = scmp.ne.s32.totalorder %s187, %s201
      %p203 = scmp.eq.s32.totalorder %s30, 0
      %p204 = por %p202, %p203
      %s206 = sadd.s32 %s205, 1
      %p209 = scmp.eq.s32.totalorder %s24, 1
      %p210 = scmp.ne.s32.totalorder %s205, %s207
      %p211 = scmp.eq.s32.totalorder %s24, 0
      %p212 = por %p210, %p211
      %p213 = scmp.ne.s32.totalorder %s205, %s207
      %p214 = scmp.eq.s32.totalorder %s29, 1
      %p215 = por %p213, %p214
      %p216 = scmp.ne.s32.totalorder %s207, %s208
      %p217 = scmp.eq.s32.totalorder %s29, 0
      %p218 = por %p216, %p217
      %p219 = scmp.ne.s32.totalorder %s207, %s208
      %p220 = scmp.eq.s32.totalorder %s30, 1
      %p221 = por %p219, %p220
      %p223 = scmp.ne.s32.totalorder %s208, %s222
      %p224 = scmp.eq.s32.totalorder %s30, 0
      %p225 = por %p223, %p224
      %s227 = sadd.s32 %s226, 1
      %p230 = scmp.eq.s32.totalorder %s24, 1
      %p231 = scmp.ne.s32.totalorder %s226, %s228
      %p232 = scmp.eq.s32.totalorder %s24, 0
      %p233 = por %p231, %p232
      %p234 = scmp.ne.s32.totalorder %s226, %s228
      %p235 = scmp.eq.s32.totalorder %s29, 1
      %p236 = por %p234, %p235
      %p237 = scmp.ne.s32.totalorder %s228, %s229
      %p238 = scmp.eq.s32.totalorder %s29, 0
      %p239 = por %p237, %p238
      %p240 = scmp.ne.s32.totalorder %s228, %s229
      %p241 = scmp.eq.s32.totalorder %s30, 1
      %p242 = por %p240, %p241
      %p244 = scmp.ne.s32.totalorder %s229, %s243
      %p245 = scmp.eq.s32.totalorder %s30, 0
      %p246 = por %p244, %p245
      %s248 = sadd.s32 %s247, 1
      %p251 = scmp.eq.s32.totalorder %s24, 1
      %p252 = scmp.ne.s32.totalorder %s247, %s249
      %p253 = scmp.eq.s32.totalorder %s24, 0
      %p254 = por %p252, %p253
      %p255 = scmp.ne.s32.totalorder %s247, %s249
      %p256 = scmp.eq.s32.totalorder %s29, 1
      %p257 = por %p255, %p256
      %p258 = scmp.ne.s32.totalorder %s249, %s250
      %p259 = scmp.eq.s32.totalorder %s29, 0
      %p260 = por %p258, %p259
      %p261 = scmp.ne.s32.totalorder %s249, %s250
      %p262 = scmp.eq.s32.totalorder %s30, 1
      %p263 = por %p261, %p262
      %p265 = scmp.ne.s32.totalorder %s250, %s264
      %p266 = scmp.eq.s32.totalorder %s30, 0
      %p267 = por %p265, %p266
      %s269 = sadd.s32 %s268, 1
      %p272 = scmp.eq.s32.totalorder %s24, 1
      %p273 = scmp.ne.s32.totalorder %s268, %s270
      %p274 = scmp.eq.s32.totalorder %s24, 0
      %p275 = por %p273, %p274
      %p276 = scmp.ne.s32.totalorder %s268, %s270
      %p277 = scmp.eq.s32.totalorder %s29, 1
      %p278 = por %p276, %p277
      %p279 = scmp.ne.s32.totalorder %s270, %s271
      %p280 = scmp.eq.s32.totalorder %s29, 0
      %p281 = por %p279, %p280
      %p282 = scmp.ne.s32.totalorder %s270, %s271
      %p283 = scmp.eq.s32.totalorder %s30, 1
      %p284 = por %p282, %p283
      %p286 = scmp.ne.s32.totalorder %s271, %s285
      %p287 = scmp.eq.s32.totalorder %s30, 0
      %p288 = por %p286, %p287
      %s290 = sadd.s32 %s289, 1
      %p293 = scmp.eq.s32.totalorder %s24, 1
      %p294 = scmp.ne.s32.totalorder %s289, %s291
      %p295 = scmp.eq.s32.totalorder %s24, 0
      %p296 = por %p294, %p295
      %p297 = scmp.ne.s32.totalorder %s289, %s291
      %p298 = scmp.eq.s32.totalorder %s29, 1
      %p299 = por %p297, %p298
      %p300 = scmp.ne.s32.totalorder %s291, %s292
      %p301 = scmp.eq.s32.totalorder %s29, 0
      %p302 = por %p300, %p301
      %p303 = scmp.ne.s32.totalorder %s291, %s292
      %p304 = scmp.eq.s32.totalorder %s30, 1
      %p305 = por %p303, %p304
      %p307 = scmp.ne.s32.totalorder %s292, %s306
      %p308 = scmp.eq.s32.totalorder %s30, 0
      %p309 = por %p307, %p308
      %s311 = sadd.s32 %s310, 1
      %p314 = scmp.eq.s32.totalorder %s24, 1
      %p315 = scmp.ne.s32.totalorder %s310, %s312
      %p316 = scmp.eq.s32.totalorder %s24, 0
      %p317 = por %p315, %p316
      %p318 = scmp.ne.s32.totalorder %s310, %s312
      %p319 = scmp.eq.s32.totalorder %s29, 1
      %p320 = por %p318, %p319
      %p321 = scmp.ne.s32.totalorder %s312, %s313
      %p322 = scmp.eq.s32.totalorder %s29, 0
      %p323 = por %p321, %p322
      %p324 = scmp.ne.s32.totalorder %s312, %s313
      %p325 = scmp.eq.s32.totalorder %s30, 1
      %p326 = por %p324, %p325
      %p328 = scmp.ne.s32.totalorder %s313, %s327
      %p329 = scmp.eq.s32.totalorder %s30, 0
      %p330 = por %p328, %p329
      %s332 = sadd.s32 %s331, 1
      %p335 = scmp.eq.s32.totalorder %s24, 1
      %p336 = scmp.ne.s32.totalorder %s331, %s333
      %p337 = scmp.eq.s32.totalorder %s24, 0
      %p338 = por %p336, %p337
      %p339 = scmp.ne.s32.totalorder %s331, %s333
      %p340 = scmp.eq.s32.totalorder %s29, 1
      %p341 = por %p339, %p340
      %p342 = scmp.ne.s32.totalorder %s333, %s334
      %p343 = scmp.eq.s32.totalorder %s29, 0
      %p344 = por %p342, %p343
      %p345 = scmp.ne.s32.totalorder %s333, %s334
      %p346 = scmp.eq.s32.totalorder %s30, 1
      %p347 = por %p345, %p346
      %p349 = scmp.ne.s32.totalorder %s334, %s348
      %p350 = scmp.eq.s32.totalorder %s30, 0
      %p351 = por %p349, %p350
      %s352 = ssub.s32 %s24, %s31
      %p353 = scmp.eq.s32.totalorder %s352, 0
      %s355 = sadd.s32 %s354, 1
      %s356 = scalar_select %p353, %s354, %s355
      %p359 = pneg %p353
      %p360 = scmp.eq.s32.totalorder %s24, 1
      %p361 = por %p359, %p360
      %p362 = scmp.ne.s32.totalorder %s354, %s357
      %p363 = scmp.eq.s32.totalorder %s24, 0
      %p364 = por %p362, %p363
      %p365 = scmp.ne.s32.totalorder %s354, %s357
      %p366 = scmp.eq.s32.totalorder %s29, 1
      %p367 = por %p365, %p366
      %p368 = scmp.ne.s32.totalorder %s357, %s358
      %p369 = scmp.eq.s32.totalorder %s29, 0
      %p370 = por %p368, %p369
      %p371 = scmp.ne.s32.totalorder %s357, %s358
      %p372 = scmp.eq.s32.totalorder %s30, 1
      %p373 = por %p371, %p372
      %p375 = scmp.ne.s32.totalorder %s358, %s374
      %p376 = scmp.eq.s32.totalorder %s30, 0
      %p377 = por %p375, %p376
      %p378 = scmp.le.s32.totalorder 1, %s24
      %p379 = scmp.lt.s32.totalorder %s24, 3
      %p380 = pnand %p378, %p379
      %p381 = pneg %p380
      // Predicated region
      $region9: #{deepconvnet_forward.1} parent=5 // pred_check
        _
      $region10: #{deepconvnet_forward.1} parent=5 // pred_check_branch
        %383 = sbr.rel (%p380) target = $region12
      $region11: #{deepconvnet_forward.1} parent=5 // pred_region
        %s384 = ssub.s32 %s24, 1
        // Predicated region
        $region13: #{deepconvnet_forward.1} parent=11 // pred_check
          %p385 = pneg %p71
        $region14: #{deepconvnet_forward.1} parent=11 // pred_check_branch
          %387 = sbr.rel (%p385) target = $region16
        $region15: #{deepconvnet_forward.1} parent=11 // pred_region
          _
        $region16: #{deepconvnet_forward.1} parent=11 // pred_fallthru
          _
        // Predicated region
        $region17: #{deepconvnet_forward.1} parent=11 // pred_check
          %p388 = pneg %p92
        $region18: #{deepconvnet_forward.1} parent=11 // pred_check_branch
          %390 = sbr.rel (%p388) target = $region20
        $region19: #{deepconvnet_forward.1} parent=11 // pred_region
          _
        $region20: #{deepconvnet_forward.1} parent=11 // pred_fallthru
          _
        // Predicated region
        $region21: #{deepconvnet_forward.1} parent=11 // pred_check
          %p391 = pneg %p113
        $region22: #{deepconvnet_forward.1} parent=11 // pred_check_branch
          %393 = sbr.rel (%p391) target = $region24
        $region23: #{deepconvnet_forward.1} parent=11 // pred_region
          _
        $region24: #{deepconvnet_forward.1} parent=11 // pred_fallthru
          _
        // Predicated region
        $region25: #{deepconvnet_forward.1} parent=11 // pred_check
          %p394 = pneg %p134
        $region26: #{deepconvnet_forward.1} parent=11 // pred_check_branch
          %396 = sbr.rel (%p394) target = $region28
        $region27: #{deepconvnet_forward.1} parent=11 // pred_region
          _
        $region28: #{deepconvnet_forward.1} parent=11 // pred_fallthru
          _
        // Predicated region
        $region29: #{deepconvnet_forward.1} parent=11 // pred_check
          %p397 = pneg %p155
        $region30: #{deepconvnet_forward.1} parent=11 // pred_check_branch
          %399 = sbr.rel (%p397) target = $region32
        $region31: #{deepconvnet_forward.1} parent=11 // pred_region
          _
        $region32: #{deepconvnet_forward.1} parent=11 // pred_fallthru
          _
        // Predicated region
        $region33: #{deepconvnet_forward.1} parent=11 // pred_check
          %p400 = pneg %p176
        $region34: #{deepconvnet_forward.1} parent=11 // pred_check_branch
          %402 = sbr.rel (%p400) target = $region36
        $region35: #{deepconvnet_forward.1} parent=11 // pred_region
          _
        $region36: #{deepconvnet_forward.1} parent=11 // pred_fallthru
          _
        // Predicated region
        $region37: #{deepconvnet_forward.1} parent=11 // pred_check
          %p403 = pneg %p197
        $region38: #{deepconvnet_forward.1} parent=11 // pred_check_branch
          %405 = sbr.rel (%p403) target = $region40
        $region39: #{deepconvnet_forward.1} parent=11 // pred_region
          _
        $region40: #{deepconvnet_forward.1} parent=11 // pred_fallthru
          _
        // Predicated region
        $region41: #{deepconvnet_forward.1} parent=11 // pred_check
          %p406 = pneg %p218
        $region42: #{deepconvnet_forward.1} parent=11 // pred_check_branch
          %408 = sbr.rel (%p406) target = $region44
        $region43: #{deepconvnet_forward.1} parent=11 // pred_region
          _
        $region44: #{deepconvnet_forward.1} parent=11 // pred_fallthru
          _
        // Predicated region
        $region45: #{deepconvnet_forward.1} parent=11 // pred_check
          %p409 = pneg %p239
        $region46: #{deepconvnet_forward.1} parent=11 // pred_check_branch
          %411 = sbr.rel (%p409) target = $region48
        $region47: #{deepconvnet_forward.1} parent=11 // pred_region
          _
        $region48: #{deepconvnet_forward.1} parent=11 // pred_fallthru
          _
        // Predicated region
        $region49: #{deepconvnet_forward.1} parent=11 // pred_check
          %p412 = pneg %p260
        $region50: #{deepconvnet_forward.1} parent=11 // pred_check_branch
          %414 = sbr.rel (%p412) target = $region52
        $region51: #{deepconvnet_forward.1} parent=11 // pred_region
          _
        $region52: #{deepconvnet_forward.1} parent=11 // pred_fallthru
          _
        // Predicated region
        $region53: #{deepconvnet_forward.1} parent=11 // pred_check
          %p415 = pneg %p281
        $region54: #{deepconvnet_forward.1} parent=11 // pred_check_branch
          %417 = sbr.rel (%p415) target = $region56
        $region55: #{deepconvnet_forward.1} parent=11 // pred_region
          _
        $region56: #{deepconvnet_forward.1} parent=11 // pred_fallthru
          _
        // Predicated region
        $region57: #{deepconvnet_forward.1} parent=11 // pred_check
          %p418 = pneg %p302
        $region58: #{deepconvnet_forward.1} parent=11 // pred_check_branch
          %420 = sbr.rel (%p418) target = $region60
        $region59: #{deepconvnet_forward.1} parent=11 // pred_region
          _
        $region60: #{deepconvnet_forward.1} parent=11 // pred_fallthru
          _
        // Predicated region
        $region61: #{deepconvnet_forward.1} parent=11 // pred_check
          %p421 = pneg %p323
        $region62: #{deepconvnet_forward.1} parent=11 // pred_check_branch
          %423 = sbr.rel (%p421) target = $region64
        $region63: #{deepconvnet_forward.1} parent=11 // pred_region
          _
        $region64: #{deepconvnet_forward.1} parent=11 // pred_fallthru
          _
        // Predicated region
        $region65: #{deepconvnet_forward.1} parent=11 // pred_check
          %p424 = pneg %p344
        $region66: #{deepconvnet_forward.1} parent=11 // pred_check_branch
          %426 = sbr.rel (%p424) target = $region68
        $region67: #{deepconvnet_forward.1} parent=11 // pred_region
          _
        $region68: #{deepconvnet_forward.1} parent=11 // pred_fallthru
          _
      $region12: #{deepconvnet_forward.1} parent=5 // pred_fallthru
        _
      %p427 = scmp.lt.s32.totalorder %s24, 2
      // Predicated region
      $region69: #{deepconvnet_forward.1} parent=5 // pred_check
        %p428 = pneg %p427
      $region70: #{deepconvnet_forward.1} parent=5 // pred_check_branch
        %430 = sbr.rel (%p428) target = $region72
      $region71: #{deepconvnet_forward.1} parent=5 // pred_region
        // Predicated region
        $region73: #{deepconvnet_forward.1} parent=71 // pred_check
          %p431 = pneg %p44
        $region74: #{deepconvnet_forward.1} parent=71 // pred_check_branch
          %433 = sbr.rel (%p431) target = $region76
        $region75: #{deepconvnet_forward.1} parent=71 // pred_region
          %p434 = scmp.lt.s32.totalorder %s24, 1
          %s435 = scalar_select %p434, %s24, 1
          %s436 = smul.addr %s435, 8
          %s437 = smul.addr %s436, 8
          %s438 = scalar_lea.vmem %s0, %s437
        $region76: #{deepconvnet_forward.1} parent=71 // pred_fallthru
          _
      $region72: #{deepconvnet_forward.1} parent=5 // pred_fallthru
        _
      %p439 = scmp.le.s32.totalorder 1, %s24
      %p440 = scmp.lt.s32.totalorder %s24, 3
      %p441 = pnand %p439, %p440
      %p442 = pneg %p441
      // Predicated region
      $region77: #{deepconvnet_forward.1} parent=5 // pred_check
        _
      $region78: #{deepconvnet_forward.1} parent=5 // pred_check_branch
        %444 = sbr.rel (%p441) target = $region80
      $region79: #{deepconvnet_forward.1} parent=5 // pred_region
        %s445 = ssub.s32 %s24, 1
        %p446 = scmp.lt.s32.totalorder %s29, 1
        %s447 = scalar_select %p446, %s29, 1
        %s448 = smul.addr %s447, 8
        %s449 = smul.addr %s448, 8
        %s450 = scalar_lea.vmem %s0, %s449
        %p451 = pneg %p50
        %p452 = pneg %p47
        %p453 = pneg %p71
        %p454 = pneg %p68
        %p455 = pneg %p92
        %p456 = pneg %p89
        %p457 = pneg %p113
        %p458 = pneg %p110
        %p459 = pneg %p134
        %p460 = pneg %p131
        %p461 = pneg %p155
        %p462 = pneg %p152
        %p463 = pneg %p176
        %p464 = pneg %p173
        %p465 = pneg %p197
        %p466 = pneg %p194
        %p467 = pneg %p218
        %p468 = pneg %p215
        %p469 = pneg %p239
        %p470 = pneg %p236
        %p471 = pneg %p260
        %p472 = pneg %p257
        %p473 = pneg %p281
        %p474 = pneg %p278
        %p475 = pneg %p302
        %p476 = pneg %p299
        %p477 = pneg %p323
        %p478 = pneg %p320
        %p479 = pneg %p344
        %p480 = pneg %p341
        %p481 = pneg %p370
        %p482 = pneg %p367
        %s483 = sand.u32 %s357, 1
        %s484 = scalar_lea.sflag [#allocation3], %s483
        %s485 = sand.u32 %s357, 1
        %s486 = scalar_lea.vmem [#allocation2], %s485
        %p487 = scmp.lt.s32.totalorder %s29, 1
        %s488 = scalar_select %p487, %s29, 1
        %s489 = smul.addr %s488, 8
        %s490 = smul.addr %s489, 8
        %s491 = scalar_lea.vmem %s0, %s490
        %v493 = vld [vmem:[%s491] sm:$0xff]
        %v494 = vld [vmem:[%s491 + $0x8] sm:$0xff]
        %v495 = vld [vmem:[%s491 + $0x10] sm:$0xff]
        %v496 = vld [vmem:[%s491 + $0x18] sm:$0xff]
        %v497 = vld [vmem:[%s491 + $0x20] sm:$0xff]
        %v498 = vld [vmem:[%s491 + $0x28] sm:$0xff]
        %v499 = vld [vmem:[%s491 + $0x30] sm:$0xff]
        %v500 = vld [vmem:[%s491 + $0x38] sm:$0xff]
        %vm509 = vcmask 1046528
        %v510 = vrot.slane %v493, 1
        %v511 = vrot.slane %v494, 1
        %v512 = vsel %vm509, %v510, %v511
        %v513 = vrot.slane %v495, 1
        %v514 = vsel %vm509, %v511, %v513
        %v515 = vrot.slane %v496, 1
        %v516 = vsel %vm509, %v513, %v515
        %v517 = vrot.slane %v497, 1
        %v518 = vsel %vm509, %v515, %v517
        %v519 = vrot.slane %v498, 1
        %v520 = vsel %vm509, %v517, %v519
        %v521 = vrot.slane %v499, 1
        %v522 = vsel %vm509, %v519, %v521
        %v523 = vrot.slane %v500, 1
        %v524 = vsel %vm509, %v521, %v523
        %525 = vrot.lane.b32.xlu0 %v512, 4
        %v526 = vpop.permute.xlu0 %525
        %527 = vrot.lane.b32.xlu0 %v514, 4
        %v528 = vpop.permute.xlu0 %527
        %529 = vrot.lane.b32.xlu0 %v516, 4
        %v530 = vpop.permute.xlu0 %529
        %531 = vrot.lane.b32.xlu0 %v518, 4
        %v532 = vpop.permute.xlu0 %531
        %533 = vrot.lane.b32.xlu0 %v520, 4
        %v534 = vpop.permute.xlu0 %533
        %535 = vrot.lane.b32.xlu0 %v522, 4
        %v536 = vpop.permute.xlu0 %535
        %537 = vrot.lane.b32.xlu0 %v524, 4
        %v538 = vpop.permute.xlu0 %537
        %539 = vrot.lane.b32.xlu0 %v523, 4
        %v540 = vpop.permute.xlu0 %539
        %vm549 = vcmask 31744
        %v550 = vsel %vm549, %v493, %v526
        %v551 = vsel %vm549, %v494, %v528
        %v552 = vsel %vm549, %v495, %v530
        %v553 = vsel %vm549, %v496, %v532
        %v554 = vsel %vm549, %v497, %v534
        %v555 = vsel %vm549, %v498, %v536
        %v556 = vsel %vm549, %v499, %v538
        %v557 = vsel %vm549, %v500, %v540
        %v558 = vpack.c.bf16 %v551, %v550
        %v559 = vpack.c.bf16 %v553, %v552
        %v560 = vpack.c.bf16 %v555, %v554
        %v561 = vpack.c.bf16 %v557, %v556
        %v562 = vld [vmem:[%s1] sm:$0xf]
        %vm563 = vcmask 64512
        %v565 = vsel %vm563, %v558, 0
        %v568 = vsel %vm563, %v559, 0
        %v571 = vsel %vm563, %v560, 0
        %v574 = vsel %vm563, %v561, 0
        %vm576 = vcmask 1043456
        %v578 = vsel %vm576, %v562, 0
        %580 = vmatprep.subr.bf16.mxu0 0
        %581 = vmatpush1.bf16.msra.mxu0 %v578
        %582 = vmatprep.subr.bf16.mxu0 0
        %583 = vmatpush1.bf16.msra.mxu0 0
        %584 = vmatprep.subr.bf16.mxu0 0
        %585 = vmatpush1.bf16.msra.mxu0 0
        %586 = vmatprep.subr.bf16.mxu0 0
        %587 = vmatpush1.bf16.msra.mxu0 0
        %588 = vmatprep.subr.bf16.mxu0 0
        %589 = vmatpush1.bf16.msra.mxu0 0
        %590 = vmatprep.subr.bf16.mxu0 0
        %591 = vmatpush1.bf16.msra.mxu0 0
        %592 = vmatprep.subr.bf16.mxu0 0
        %593 = vmatpush1.bf16.msra.mxu0 0
        %594 = vmatprep.subr.bf16.mxu0 0
        %595 = vmatpush1.bf16.msra.mxu0 0
        %596 = vmatprep.subr.bf16.mxu0 0
        %597 = vmatpush1.bf16.msra.mxu0 0
        %598 = vmatprep.subr.bf16.mxu0 0
        %599 = vmatpush1.bf16.msra.mxu0 0
        %600 = vmatprep.subr.bf16.mxu0 0
        %601 = vmatpush1.bf16.msra.mxu0 0
        %602 = vmatprep.subr.bf16.mxu0 0
        %603 = vmatpush1.bf16.msra.mxu0 0
        %604 = vmatprep.subr.bf16.mxu0 0
        %605 = vmatpush1.bf16.msra.mxu0 0
        %606 = vmatprep.subr.bf16.mxu0 0
        %607 = vmatpush1.bf16.msra.mxu0 0
        %608 = vmatprep.subr.bf16.mxu0 0
        %609 = vmatpush1.bf16.msra.mxu0 0
        %610 = vmatprep.subr.bf16.mxu0 0
        %611 = vmatpush1.bf16.msra.mxu0 0
        %612 = vmatprep.mubr.bf16.mxu0 0
        %613 = vmatmul.mubr.bf16.gmra.mrb[0].mxu0 %v565
        %v614 = vpop.f32.mrb[0].mxu0
        %v615 = vadd.f32 0.0, %v614
        %v616 = vpop.f32.mrb[0].mxu0
        %v617 = vpop.f32.mrb[0].mxu0
        %v618 = vadd.f32 0.0, %v617
        %v619 = vpop.f32.mrb[0].mxu0
        %620 = vmatprep.mubr.bf16.mxu0 0
        %621 = vmatmul.mubr.bf16.gmra.mrb[0].mxu0 %v568
        %v622 = vpop.f32.mrb[0].mxu0
        %v623 = vadd.f32 0.0, %v622
        %v624 = vpop.f32.mrb[0].mxu0
        %v625 = vpop.f32.mrb[0].mxu0
        %v626 = vadd.f32 0.0, %v625
        %v627 = vpop.f32.mrb[0].mxu0
        %628 = vmatprep.mubr.bf16.mxu0 0
        %629 = vmatmul.mubr.bf16.gmra.mrb[0].mxu0 %v571
        %v630 = vpop.f32.mrb[0].mxu0
        %v631 = vadd.f32 0.0, %v630
        %v632 = vpop.f32.mrb[0].mxu0
        %v633 = vpop.f32.mrb[0].mxu0
        %v634 = vadd.f32 0.0, %v633
        %v635 = vpop.f32.mrb[0].mxu0
        %636 = vmatprep.mubr.bf16.mxu0 0
        %637 = vmatmul.mubr.bf16.gmra.mrb[0].mxu0 %v574
        %v638 = vpop.f32.mrb[0].mxu0
        %v639 = vadd.f32 0.0, %v638
        %v640 = vpop.f32.mrb[0].mxu0
        %v641 = vpop.f32.mrb[0].mxu0
        %v642 = vadd.f32 0.0, %v641
        %v643 = vpop.f32.mrb[0].mxu0
        %644 = vdwg.mxu0
        %v645 = vld [vmem:[%s2] sm:$0x1]
        %v647 = vlaneseq
        %v648 = vshrl.u32 %v647, 7
        %v649 = vsub.s32 0, %v648
        %v650 = vrot.slane %v645, %v649
        %v652 = vmul.f32 %v615, %v650
        %v653 = vmul.f32 %v618, %v650
        %v654 = vmul.f32 %v623, %v650
        %v655 = vmul.f32 %v626, %v650
        %v656 = vmul.f32 %v631, %v650
        %v657 = vmul.f32 %v634, %v650
        %v658 = vmul.f32 %v639, %v650
        %v659 = vmul.f32 %v642, %v650
        %v660 = vld [vmem:[%s3] sm:$0x1]
        %v662 = vlaneseq
        %v663 = vshrl.u32 %v662, 7
        %v664 = vsub.s32 0, %v663
        %v665 = vrot.slane %v660, %v664
        %v667 = vadd.f32 %v652, %v665
        %v668 = vadd.f32 %v653, %v665
        %v669 = vadd.f32 %v654, %v665
        %v670 = vadd.f32 %v655, %v665
        %v671 = vadd.f32 %v656, %v665
        %v672 = vadd.f32 %v657, %v665
        %v673 = vadd.f32 %v658, %v665
        %v674 = vadd.f32 %v659, %v665
        %vm675 = vcmp.gt.f32.partialorder %v667, 0.0
        %vm676 = vcmp.gt.f32.partialorder %v668, 0.0
        %vm677 = vcmp.gt.f32.partialorder %v669, 0.0
        %vm678 = vcmp.gt.f32.partialorder %v670, 0.0
        %vm679 = vcmp.gt.f32.partialorder %v671, 0.0
        %vm680 = vcmp.gt.f32.partialorder %v672, 0.0
        %vm681 = vcmp.gt.f32.partialorder %v673, 0.0
        %vm682 = vcmp.gt.f32.partialorder %v674, 0.0
        %v683 = vmin.f32 %v667, 0.0
        %v684 = vmin.f32 %v668, 0.0
        %v685 = vmin.f32 %v669, 0.0
        %v686 = vmin.f32 %v670, 0.0
        %v687 = vmin.f32 %v671, 0.0
        %v688 = vmin.f32 %v672, 0.0
        %v689 = vmin.f32 %v673, 0.0
        %v690 = vmin.f32 %v674, 0.0
        %v691 = vmul.f32 %v683, 1.442695
        %v692 = vpow.pop %v691
        %v693 = vmul.f32 %v684, 1.442695
        %v694 = vpow.pop %v693
        %v695 = vmul.f32 %v685, 1.442695
        %v696 = vpow.pop %v695
        %v697 = vmul.f32 %v686, 1.442695
        %v698 = vpow.pop %v697
        %v699 = vmul.f32 %v687, 1.442695
        %v700 = vpow.pop %v699
        %v701 = vmul.f32 %v688, 1.442695
        %v702 = vpow.pop %v701
        %v703 = vmul.f32 %v689, 1.442695
        %v704 = vpow.pop %v703
        %v705 = vmul.f32 %v690, 1.442695
        %v706 = vpow.pop %v705
        %v707 = vsub.f32 %v692, 1.0
        %v708 = vsub.f32 %v694, 1.0
        %v709 = vsub.f32 %v696, 1.0
        %v710 = vsub.f32 %v698, 1.0
        %v711 = vsub.f32 %v700, 1.0
        %v712 = vsub.f32 %v702, 1.0
        %v713 = vsub.f32 %v704, 1.0
        %v714 = vsub.f32 %v706, 1.0
        %v715 = vsel %vm675, %v667, %v707
        %v716 = vsel %vm676, %v668, %v708
        %v717 = vsel %vm677, %v669, %v709
        %v718 = vsel %vm678, %v670, %v710
        %v719 = vsel %vm679, %v671, %v711
        %v720 = vsel %vm680, %v672, %v712
        %v721 = vsel %vm681, %v673, %v713
        %v722 = vsel %vm682, %v674, %v714
        %v731 = vrot.slane %v715, 1
        %v732 = vrot.slane %v716, 1
        %v733 = vsel %vm509, %v731, %v732
        %v734 = vrot.slane %v717, 1
        %v735 = vsel %vm509, %v732, %v734
        %v736 = vrot.slane %v718, 1
        %v737 = vsel %vm509, %v734, %v736
        %v738 = vrot.slane %v719, 1
        %v739 = vsel %vm509, %v736, %v738
        %v740 = vrot.slane %v720, 1
        %v741 = vsel %vm509, %v738, %v740
        %v742 = vrot.slane %v721, 1
        %v743 = vsel %vm509, %v740, %v742
        %v744 = vrot.slane %v722, 1
        %v745 = vsel %vm509, %v742, %v744
        %v754 = vmax.f32 %v715, %v733
        %v755 = vmax.f32 %v716, %v735
        %v756 = vmax.f32 %v717, %v737
        %v757 = vmax.f32 %v718, %v739
        %v758 = vmax.f32 %v719, %v741
        %v759 = vmax.f32 %v720, %v743
        %v760 = vmax.f32 %v721, %v745
        %v761 = vmax.f32 %v722, %v744
        %v762 = vlaneseq
        %v763 = vshrl.u32 %v762, 7
        %v764 = vadd.s32 %v763, 8
        %v765 = vadd.s32 %v763, 16
        %v766 = vadd.s32 %v763, 24
        %v767 = vlaneseq
        %v768 = vand.u32 %v767, 127
        %v769 = vmul.u32 %v763, 2
        %v770 = vmul.u32 %v764, 2
        %v771 = vmul.u32 %v765, 2
        %v772 = vmul.u32 %v766, 2
        %vm773 = vcmp.eq.s32.totalorder %v768, %v769
        %vm774 = vcmp.eq.s32.totalorder %v768, %v770
        %vm775 = vcmp.eq.s32.totalorder %v768, %v771
        %vm776 = vcmp.eq.s32.totalorder %v768, %v772
        %v777 = vsel %vm773, 1, 0
        %v778 = vsel %vm774, 1, 0
        %v779 = vsel %vm775, 1, 0
        %v780 = vsel %vm776, 1, 0
        %v781 = vcvt.s32.f32 %v777
        %v782 = vcvt.s32.f32 %v778
        %v783 = vcvt.s32.f32 %v779
        %v784 = vcvt.s32.f32 %v780
        %vm785 = vcmask 506880
        %v787 = vsel %vm785, %v781, 0
        %v790 = vsel %vm785, %v782, 0
        %v793 = vsel %vm785, %v783, 0
        %v796 = vsel %vm785, %v784, 0
        %vm798 = vcmask 1045504
        %v800 = vsel %vm798, %v761, 0
        %802 = vmatprep.subr.mxu0 0.0
        %803 = vmatpush1.msra.mxu0 %v754
        %804 = vmatprep.subr.mxu0 0.0
        %805 = vmatpush1.msra.mxu0 %v755
        %806 = vmatprep.subr.mxu0 0.0
        %807 = vmatpush1.msra.mxu0 %v756
        %808 = vmatprep.subr.mxu0 0.0
        %809 = vmatpush1.msra.mxu0 %v757
        %810 = vmatprep.subr.mxu0 0.0
        %811 = vmatpush1.msra.mxu0 %v758
        %812 = vmatprep.subr.mxu0 0.0
        %813 = vmatpush1.msra.mxu0 %v759
        %814 = vmatprep.subr.mxu0 0.0
        %815 = vmatpush1.msra.mxu0 %v760
        %816 = vmatprep.subr.mxu0 0.0
        %817 = vmatpush1.msra.mxu0 %v800
        %818 = vmatprep.subr.mxu0 0.0
        %819 = vmatpush1.msra.mxu0 0.0
        %820 = vmatprep.subr.mxu0 0.0
        %821 = vmatpush1.msra.mxu0 0.0
        %822 = vmatprep.subr.mxu0 0.0
        %823 = vmatpush1.msra.mxu0 0.0
        %824 = vmatprep.subr.mxu0 0.0
        %825 = vmatpush1.msra.mxu0 0.0
        %826 = vmatprep.subr.mxu0 0.0
        %827 = vmatpush1.msra.mxu0 0.0
        %828 = vmatprep.subr.mxu0 0.0
        %829 = vmatpush1.msra.mxu0 0.0
        %830 = vmatprep.subr.mxu0 0.0
        %831 = vmatpush1.msra.mxu0 0.0
        %832 = vmatprep.subr.mxu0 0.0
        %833 = vmatpush1.msra.mxu0 0.0
        %834 = vmatprep.subr.mxu0 0.0
        %835 = vmatpush1.msra.mxu0 0.0
        %836 = vmatprep.subr.mxu0 0.0
        %837 = vmatpush1.msra.mxu0 0.0
        %838 = vmatprep.subr.mxu0 0.0
        %839 = vmatpush1.msra.mxu0 0.0
        %840 = vmatprep.subr.mxu0 0.0
        %841 = vmatpush1.msra.mxu0 0.0
        %842 = vmatprep.subr.mxu0 0.0
        %843 = vmatpush1.msra.mxu0 0.0
        %844 = vmatprep.subr.mxu0 0.0
        %845 = vmatpush1.msra.mxu0 0.0
        %846 = vmatprep.subr.mxu0 0.0
        %847 = vmatpush1.msra.mxu0 0.0
        %848 = vmatprep.subr.mxu0 0.0
        %849 = vmatpush1.msra.mxu0 0.0
        %850 = vmatprep.subr.mxu0 0.0
        %851 = vmatpush1.msra.mxu0 0.0
        %852 = vmatprep.subr.mxu0 0.0
        %853 = vmatpush1.msra.mxu0 0.0
        %854 = vmatprep.subr.mxu0 0.0
        %855 = vmatpush1.msra.mxu0 0.0
        %856 = vmatprep.subr.mxu0 0.0
        %857 = vmatpush1.msra.mxu0 0.0
        %858 = vmatprep.subr.mxu0 0.0
        %859 = vmatpush1.msra.mxu0 0.0
        %860 = vmatprep.subr.mxu0 0.0
        %861 = vmatpush1.msra.mxu0 0.0
        %862 = vmatprep.subr.mxu0 0.0
        %863 = vmatpush1.msra.mxu0 0.0
        %864 = vmatprep.subr.mxu0 0.0
        %865 = vmatpush1.msra.mxu0 0.0
        %866 = vmatprep.mubr.f32.mxu0 0.0
        %867 = vmatmul.mubr.f32.gmra.mrb[0].mxu0 %v787
        %v868 = vpop.f32.mrb[0].mxu0
        %v869 = vadd.f32 0.0, %v868
        %v870 = vpop.f32.mrb[0].mxu0
        %871 = vmatprep.mubr.f32.mxu0 0.0
        %872 = vmatmul.mubr.f32.gmra.mrb[0].mxu0 %v790
        %v873 = vpop.f32.mrb[0].mxu0
        %v874 = vadd.f32 0.0, %v873
        %v875 = vpop.f32.mrb[0].mxu0
        %876 = vmatprep.mubr.f32.mxu0 0.0
        %877 = vmatmul.mubr.f32.gmra.mrb[0].mxu0 %v793
        %v878 = vpop.f32.mrb[0].mxu0
        %v879 = vadd.f32 0.0, %v878
        %v880 = vpop.f32.mrb[0].mxu0
        %881 = vmatprep.mubr.f32.mxu0 0.0
        %882 = vmatmul.mubr.f32.gmra.mrb[0].mxu0 %v796
        %v883 = vpop.f32.mrb[0].mxu0
        %v884 = vadd.f32 0.0, %v883
        %v885 = vpop.f32.mrb[0].mxu0
        %886 = vdwg.mxu0
        %v891 = vrot.slane %v869, 1
        %v892 = vrot.slane %v874, 1
        %v893 = vsel %vm509, %v891, %v892
        %v894 = vrot.slane %v879, 1
        %v895 = vsel %vm509, %v892, %v894
        %v896 = vrot.slane %v884, 1
        %v897 = vsel %vm509, %v894, %v896
        %898 = vrot.lane.b32.xlu0 %v893, 25
        %v899 = vpop.permute.xlu0 %898
        %900 = vrot.lane.b32.xlu0 %v895, 25
        %v901 = vpop.permute.xlu0 %900
        %902 = vrot.lane.b32.xlu0 %v897, 25
        %v903 = vpop.permute.xlu0 %902
        %904 = vrot.lane.b32.xlu0 %v896, 25
        %v905 = vpop.permute.xlu0 %904
        %vm910 = vcmask 203776
        %v911 = vsel %vm910, %v869, %v899
        %v912 = vsel %vm910, %v874, %v901
        %v913 = vsel %vm910, %v879, %v903
        %v914 = vsel %vm910, %v884, %v905
        %v915 = vpack.c.bf16 %v912, %v911
        %v916 = vpack.c.bf16 %v914, %v913
        %v917 = vld [vmem:[%s4] sm:$0xf]
        %v918 = vld [vmem:[%s4 + $0x4] sm:$0xf]
        %v919 = vld [vmem:[%s4 + $0x8] sm:$0xf]
        %v920 = vld [vmem:[%s4 + $0xc] sm:$0xf]
        %v921 = vld [vmem:[%s4 + $0x10] sm:$0xf]
        %v922 = vld [vmem:[%s4 + $0x14] sm:$0xf]
        %v923 = vld [vmem:[%s4 + $0x18] sm:$0x1]
        %v931 = vunpack.c.l.b16 %v917
        %v932 = vunpack.c.l.b16 %v918
        %v933 = vunpack.c.l.b16 %v919
        %v934 = vunpack.c.l.b16 %v920
        %v935 = vunpack.c.l.b16 %v921
        %v936 = vunpack.c.l.b16 %v922
        %v937 = vunpack.c.l.b16 %v923
        %v938 = vpack.c.b16 %v932, %v931
        %v939 = vpack.c.b16 %v934, %v933
        %v940 = vpack.c.b16 %v936, %v935
        %v941 = vpack.c.b16 %v937, %v937
        %vm945 = vcmask 408576
        %v947 = vsel %vm945, %v915, 0
        %v950 = vsel %vm945, %v916, 0
        %vm952 = vcmask 1040384
        %v954 = vsel %vm952, %v941, 0
        %956 = vmatprep.subr.bf16.mxu0 0
        %957 = vmatpush1.bf16.msra.mxu0 %v938
        %958 = vmatprep.subr.bf16.mxu0 0
        %959 = vmatpush1.bf16.msra.mxu0 %v939
        %960 = vmatprep.subr.bf16.mxu0 0
        %961 = vmatpush1.bf16.msra.mxu0 %v940
        %962 = vmatprep.subr.bf16.mxu0 0
        %963 = vmatpush1.bf16.msra.mxu0 %v954
        %964 = vmatprep.subr.bf16.mxu0 0
        %965 = vmatpush1.bf16.msra.mxu0 0
        %966 = vmatprep.subr.bf16.mxu0 0
        %967 = vmatpush1.bf16.msra.mxu0 0
        %968 = vmatprep.subr.bf16.mxu0 0
        %969 = vmatpush1.bf16.msra.mxu0 0
        %970 = vmatprep.subr.bf16.mxu0 0
        %971 = vmatpush1.bf16.msra.mxu0 0
        %972 = vmatprep.subr.bf16.mxu0 0
        %973 = vmatpush1.bf16.msra.mxu0 0
        %974 = vmatprep.subr.bf16.mxu0 0
        %975 = vmatpush1.bf16.msra.mxu0 0
        %976 = vmatprep.subr.bf16.mxu0 0
        %977 = vmatpush1.bf16.msra.mxu0 0
        %978 = vmatprep.subr.bf16.mxu0 0
        %979 = vmatpush1.bf16.msra.mxu0 0
        %980 = vmatprep.subr.bf16.mxu0 0
        %981 = vmatpush1.bf16.msra.mxu0 0
        %982 = vmatprep.subr.bf16.mxu0 0
        %983 = vmatpush1.bf16.msra.mxu0 0
        %984 = vmatprep.subr.bf16.mxu0 0
        %985 = vmatpush1.bf16.msra.mxu0 0
        %986 = vmatprep.subr.bf16.mxu0 0
        %987 = vmatpush1.bf16.msra.mxu0 0
        %988 = vmatprep.mubr.bf16.mxu0 0
        %989 = vmatmul.mubr.bf16.gmra.mrb[0].mxu0 %v947
        %v990 = vpop.f32.mrb[0].mxu0
        %v991 = vadd.f32 0.0, %v990
        %v992 = vpop.f32.mrb[0].mxu0
        %v993 = vpop.f32.mrb[0].mxu0
        %v994 = vadd.f32 0.0, %v993
        %v995 = vpop.f32.mrb[0].mxu0
        %996 = vmatprep.mubr.bf16.mxu0 0
        %997 = vmatmul.mubr.bf16.gmra.mrb[0].mxu0 %v950
        %v998 = vpop.f32.mrb[0].mxu0
        %v999 = vadd.f32 0.0, %v998
        %v1000 = vpop.f32.mrb[0].mxu0
        %v1001 = vpop.f32.mrb[0].mxu0
        %v1002 = vadd.f32 0.0, %v1001
        %v1003 = vpop.f32.mrb[0].mxu0
        %1004 = vdwg.mxu0
        %v1005 = vld [vmem:[%s5] sm:$0x1]
        %v1007 = vlaneseq
        %v1008 = vshrl.u32 %v1007, 7
        %v1009 = vsub.s32 0, %v1008
        %v1010 = vrot.slane %v1005, %v1009
        %v1012 = vmul.f32 %v991, %v1010
        %v1013 = vmul.f32 %v994, %v1010
        %v1014 = vmul.f32 %v999, %v1010
        %v1015 = vmul.f32 %v1002, %v1010
        %v1016 = vld [vmem:[%s6] sm:$0x1]
        %v1018 = vlaneseq
        %v1019 = vshrl.u32 %v1018, 7
        %v1020 = vsub.s32 0, %v1019
        %v1021 = vrot.slane %v1016, %v1020
        %v1023 = vadd.f32 %v1012, %v1021
        %v1024 = vadd.f32 %v1013, %v1021
        %v1025 = vadd.f32 %v1014, %v1021
        %v1026 = vadd.f32 %v1015, %v1021
        %vm1027 = vcmp.gt.f32.partialorder %v1023, 0.0
        %vm1028 = vcmp.gt.f32.partialorder %v1024, 0.0
        %vm1029 = vcmp.gt.f32.partialorder %v1025, 0.0
        %vm1030 = vcmp.gt.f32.partialorder %v1026, 0.0
        %v1031 = vmin.f32 %v1023, 0.0
        %v1032 = vmin.f32 %v1024, 0.0
        %v1033 = vmin.f32 %v1025, 0.0
        %v1034 = vmin.f32 %v1026, 0.0
        %v1035 = vmul.f32 %v1031, 1.442695
        %v1036 = vpow.pop %v1035
        %v1037 = vmul.f32 %v1032, 1.442695
        %v1038 = vpow.pop %v1037
        %v1039 = vmul.f32 %v1033, 1.442695
        %v1040 = vpow.pop %v1039
        %v1041 = vmul.f32 %v1034, 1.442695
        %v1042 = vpow.pop %v1041
        %v1043 = vsub.f32 %v1036, 1.0
        %v1044 = vsub.f32 %v1038, 1.0
        %v1045 = vsub.f32 %v1040, 1.0
        %v1046 = vsub.f32 %v1042, 1.0
        %v1047 = vsel %vm1027, %v1023, %v1043
        %v1048 = vsel %vm1028, %v1024, %v1044
        %v1049 = vsel %vm1029, %v1025, %v1045
        %v1050 = vsel %vm1030, %v1026, %v1046
        %v1055 = vrot.slane %v1047, 1
        %v1056 = vrot.slane %v1048, 1
        %v1057 = vsel %vm509, %v1055, %v1056
        %v1058 = vrot.slane %v1049, 1
        %v1059 = vsel %vm509, %v1056, %v1058
        %v1060 = vrot.slane %v1050, 1
        %v1061 = vsel %vm509, %v1058, %v1060
        %v1066 = vmax.f32 %v1047, %v1057
        %v1067 = vmax.f32 %v1048, %v1059
        %v1068 = vmax.f32 %v1049, %v1061
        %v1069 = vmax.f32 %v1050, %v1060
        %vm1070 = vcmask 236544
        %v1071 = vsel %vm1070, %v781, 0
        %v1073 = vsel %vm1070, %v782, 0
        %vm1075 = vcmask 1044480
        %v1077 = vsel %vm1075, %v1069, 0
        %1079 = vmatprep.subr.mxu0 0.0
        %1080 = vmatpush1.msra.mxu0 %v1066
        %1081 = vmatprep.subr.mxu0 0.0
        %1082 = vmatpush1.msra.mxu0 %v1067
        %1083 = vmatprep.subr.mxu0 0.0
        %1084 = vmatpush1.msra.mxu0 %v1068
        %1085 = vmatprep.subr.mxu0 0.0
        %1086 = vmatpush1.msra.mxu0 %v1077
        %1087 = vmatprep.subr.mxu0 0.0
        %1088 = vmatpush1.msra.mxu0 0.0
        %1089 = vmatprep.subr.mxu0 0.0
        %1090 = vmatpush1.msra.mxu0 0.0
        %1091 = vmatprep.subr.mxu0 0.0
        %1092 = vmatpush1.msra.mxu0 0.0
        %1093 = vmatprep.subr.mxu0 0.0
        %1094 = vmatpush1.msra.mxu0 0.0
        %1095 = vmatprep.subr.mxu0 0.0
        %1096 = vmatpush1.msra.mxu0 0.0
        %1097 = vmatprep.subr.mxu0 0.0
        %1098 = vmatpush1.msra.mxu0 0.0
        %1099 = vmatprep.subr.mxu0 0.0
        %1100 = vmatpush1.msra.mxu0 0.0
        %1101 = vmatprep.subr.mxu0 0.0
        %1102 = vmatpush1.msra.mxu0 0.0
        %1103 = vmatprep.subr.mxu0 0.0
        %1104 = vmatpush1.msra.mxu0 0.0
        %1105 = vmatprep.subr.mxu0 0.0
        %1106 = vmatpush1.msra.mxu0 0.0
        %1107 = vmatprep.subr.mxu0 0.0
        %1108 = vmatpush1.msra.mxu0 0.0
        %1109 = vmatprep.subr.mxu0 0.0
        %1110 = vmatpush1.msra.mxu0 0.0
        %1111 = vmatprep.subr.mxu0 0.0
        %1112 = vmatpush1.msra.mxu0 0.0
        %1113 = vmatprep.subr.mxu0 0.0
        %1114 = vmatpush1.msra.mxu0 0.0
        %1115 = vmatprep.subr.mxu0 0.0
        %1116 = vmatpush1.msra.mxu0 0.0
        %1117 = vmatprep.subr.mxu0 0.0
        %1118 = vmatpush1.msra.mxu0 0.0
        %1119 = vmatprep.subr.mxu0 0.0
        %1120 = vmatpush1.msra.mxu0 0.0
        %1121 = vmatprep.subr.mxu0 0.0
        %1122 = vmatpush1.msra.mxu0 0.0
        %1123 = vmatprep.subr.mxu0 0.0
        %1124 = vmatpush1.msra.mxu0 0.0
        %1125 = vmatprep.subr.mxu0 0.0
        %1126 = vmatpush1.msra.mxu0 0.0
        %1127 = vmatprep.subr.mxu0 0.0
        %1128 = vmatpush1.msra.mxu0 0.0
        %1129 = vmatprep.subr.mxu0 0.0
        %1130 = vmatpush1.msra.mxu0 0.0
        %1131 = vmatprep.subr.mxu0 0.0
        %1132 = vmatpush1.msra.mxu0 0.0
        %1133 = vmatprep.subr.mxu0 0.0
        %1134 = vmatpush1.msra.mxu0 0.0
        %1135 = vmatprep.subr.mxu0 0.0
        %1136 = vmatpush1.msra.mxu0 0.0
        %1137 = vmatprep.subr.mxu0 0.0
        %1138 = vmatpush1.msra.mxu0 0.0
        %1139 = vmatprep.subr.mxu0 0.0
        %1140 = vmatpush1.msra.mxu0 0.0
        %1141 = vmatprep.subr.mxu0 0.0
        %1142 = vmatpush1.msra.mxu0 0.0
        %1143 = vmatprep.mubr.f32.mxu0 0.0
        %1144 = vmatmul.mubr.f32.gmra.mrb[0].mxu0 %v1071
        %v1145 = vpop.f32.mrb[0].mxu0
        %v1146 = vadd.f32 0.0, %v1145
        %v1147 = vpop.f32.mrb[0].mxu0
        %1148 = vmatprep.mubr.f32.mxu0 0.0
        %1149 = vmatmul.mubr.f32.gmra.mrb[0].mxu0 %v1073
        %v1150 = vpop.f32.mrb[0].mxu0
        %v1151 = vadd.f32 0.0, %v1150
        %v1152 = vpop.f32.mrb[0].mxu0
        %1153 = vdwg.mxu0
        %v1156 = vrot.slane %v1146, 1
        %v1157 = vrot.slane %v1151, 1
        %v1158 = vsel %vm509, %v1156, %v1157
        %1159 = vrot.lane.b32.xlu0 %v1158, 50
        %v1160 = vpop.permute.xlu0 %1159
        %1161 = vrot.lane.b32.xlu0 %v1157, 50
        %v1162 = vpop.permute.xlu0 %1161
        %v1165 = vsel %vm945, %v1146, %v1160
        %v1166 = vsel %vm945, %v1151, %v1162
        %v1167 = vpack.c.bf16 %v1166, %v1165
        %v1168 = vld [vmem:[%s7] sm:$0xf]
        %v1169 = vld [vmem:[%s7 + $0x4] sm:$0xf]
        %v1170 = vld [vmem:[%s7 + $0x8] sm:$0xf]
        %v1171 = vld [vmem:[%s7 + $0xc] sm:$0xf]
        %v1172 = vld [vmem:[%s7 + $0x10] sm:$0xf]
        %v1173 = vld [vmem:[%s7 + $0x14] sm:$0xf]
        %v1174 = vld [vmem:[%s7 + $0x18] sm:$0xf]
        %v1175 = vld [vmem:[%s7 + $0x1c] sm:$0xf]
        %v1176 = vld [vmem:[%s7 + $0x20] sm:$0xf]
        %v1177 = vld [vmem:[%s7 + $0x24] sm:$0xf]
        %v1178 = vld [vmem:[%s7 + $0x28] sm:$0xf]
        %v1179 = vld [vmem:[%s7 + $0x2c] sm:$0xf]
        %v1180 = vld [vmem:[%s7 + $0x30] sm:$0x3]
        %v1194 = vunpack.c.l.b16 %v1168
        %v1195 = vunpack.c.l.b16 %v1169
        %v1196 = vunpack.c.l.b16 %v1170
        %v1197 = vunpack.c.l.b16 %v1171
        %v1198 = vunpack.c.l.b16 %v1172
        %v1199 = vunpack.c.l.b16 %v1173
        %v1200 = vunpack.c.l.b16 %v1174
        %v1201 = vunpack.c.l.b16 %v1175
        %v1202 = vunpack.c.l.b16 %v1176
        %v1203 = vunpack.c.l.b16 %v1177
        %v1204 = vunpack.c.l.b16 %v1178
        %v1205 = vunpack.c.l.b16 %v1179
        %v1206 = vunpack.c.l.b16 %v1180
        %v1207 = vpack.c.b16 %v1195, %v1194
        %v1208 = vpack.c.b16 %v1197, %v1196
        %v1209 = vpack.c.b16 %v1199, %v1198
        %v1210 = vpack.c.b16 %v1201, %v1200
        %v1211 = vpack.c.b16 %v1203, %v1202
        %v1212 = vpack.c.b16 %v1205, %v1204
        %v1213 = vpack.c.b16 %v1206, %v1206
        %vm1220 = vcmask 818176
        %v1222 = vsel %vm1220, %v1167, 0
        %vm1224 = vcmask 1041408
        %v1226 = vsel %vm1224, %v1213, 0
        %1228 = vmatprep.subr.bf16.mxu0 0
        %1229 = vmatpush1.bf16.msra.mxu0 %v1207
        %1230 = vmatprep.subr.bf16.mxu0 0
        %1231 = vmatpush1.bf16.msra.mxu0 %v1208
        %1232 = vmatprep.subr.bf16.mxu0 0
        %1233 = vmatpush1.bf16.msra.mxu0 %v1209
        %1234 = vmatprep.subr.bf16.mxu0 0
        %1235 = vmatpush1.bf16.msra.mxu0 %v1210
        %1236 = vmatprep.subr.bf16.mxu0 0
        %1237 = vmatpush1.bf16.msra.mxu0 %v1211
        %1238 = vmatprep.subr.bf16.mxu0 0
        %1239 = vmatpush1.bf16.msra.mxu0 %v1212
        %1240 = vmatprep.subr.bf16.mxu0 0
        %1241 = vmatpush1.bf16.msra.mxu0 %v1226
        %1242 = vmatprep.subr.bf16.mxu0 0
        %1243 = vmatpush1.bf16.msra.mxu0 0
        %1244 = vmatprep.subr.bf16.mxu0 0
        %1245 = vmatpush1.bf16.msra.mxu0 0
        %1246 = vmatprep.subr.bf16.mxu0 0
        %1247 = vmatpush1.bf16.msra.mxu0 0
        %1248 = vmatprep.subr.bf16.mxu0 0
        %1249 = vmatpush1.bf16.msra.mxu0 0
        %1250 = vmatprep.subr.bf16.mxu0 0
        %1251 = vmatpush1.bf16.msra.mxu0 0
        %1252 = vmatprep.subr.bf16.mxu0 0
        %1253 = vmatpush1.bf16.msra.mxu0 0
        %1254 = vmatprep.subr.bf16.mxu0 0
        %1255 = vmatpush1.bf16.msra.mxu0 0
        %1256 = vmatprep.subr.bf16.mxu0 0
        %1257 = vmatpush1.bf16.msra.mxu0 0
        %1258 = vmatprep.subr.bf16.mxu0 0
        %1259 = vmatpush1.bf16.msra.mxu0 0
        %1260 = vmatprep.mubr.bf16.mxu0 0
        %1261 = vmatmul.mubr.bf16.gmra.mrb[0].mxu0 %v1222
        %v1262 = vpop.f32.mrb[0].mxu0
        %v1263 = vadd.f32 0.0, %v1262
        %v1264 = vpop.f32.mrb[0].mxu0
        %v1265 = vpop.f32.mrb[0].mxu0
        %v1266 = vadd.f32 0.0, %v1265
        %v1267 = vpop.f32.mrb[0].mxu0
        %1268 = vdwg.mxu0
        %v1269 = vld [vmem:[%s8] sm:$0x1]
        %v1271 = vlaneseq
        %v1272 = vshrl.u32 %v1271, 7
        %v1273 = vsub.s32 0, %v1272
        %v1274 = vrot.slane %v1269, %v1273
        %v1276 = vmul.f32 %v1263, %v1274
        %v1277 = vmul.f32 %v1266, %v1274
        %v1278 = vld [vmem:[%s9] sm:$0x1]
        %v1280 = vlaneseq
        %v1281 = vshrl.u32 %v1280, 7
        %v1282 = vsub.s32 0, %v1281
        %v1283 = vrot.slane %v1278, %v1282
        %v1285 = vadd.f32 %v1276, %v1283
        %v1286 = vadd.f32 %v1277, %v1283
        %vm1287 = vcmp.gt.f32.partialorder %v1285, 0.0
        %vm1288 = vcmp.gt.f32.partialorder %v1286, 0.0
        %v1289 = vmin.f32 %v1285, 0.0
        %v1290 = vmin.f32 %v1286, 0.0
        %v1291 = vmul.f32 %v1289, 1.442695
        %v1292 = vpow.pop %v1291
        %v1293 = vmul.f32 %v1290, 1.442695
        %v1294 = vpow.pop %v1293
        %v1295 = vsub.f32 %v1292, 1.0
        %v1296 = vsub.f32 %v1294, 1.0
        %v1297 = vsel %vm1287, %v1285, %v1295
        %v1298 = vsel %vm1288, %v1286, %v1296
        %v1301 = vrot.slane %v1297, 1
        %v1302 = vrot.slane %v1298, 1
        %v1303 = vsel %vm509, %v1301, %v1302
        %v1306 = vmax.f32 %v1297, %v1303
        %v1307 = vmax.f32 %v1298, %v1302
        %vm1308 = vcmask 105472
        %v1309 = vsel %vm1308, %v781, 0
        %v1312 = vsel %vm1075, %v1307, 0
        %1314 = vmatprep.subr.mxu0 0.0
        %1315 = vmatpush1.msra.mxu0 %v1306
        %1316 = vmatprep.subr.mxu0 0.0
        %1317 = vmatpush1.msra.mxu0 %v1312
        %1318 = vmatprep.subr.mxu0 0.0
        %1319 = vmatpush1.msra.mxu0 0.0
        %1320 = vmatprep.subr.mxu0 0.0
        %1321 = vmatpush1.msra.mxu0 0.0
        %1322 = vmatprep.subr.mxu0 0.0
        %1323 = vmatpush1.msra.mxu0 0.0
        %1324 = vmatprep.subr.mxu0 0.0
        %1325 = vmatpush1.msra.mxu0 0.0
        %1326 = vmatprep.subr.mxu0 0.0
        %1327 = vmatpush1.msra.mxu0 0.0
        %1328 = vmatprep.subr.mxu0 0.0
        %1329 = vmatpush1.msra.mxu0 0.0
        %1330 = vmatprep.subr.mxu0 0.0
        %1331 = vmatpush1.msra.mxu0 0.0
        %1332 = vmatprep.subr.mxu0 0.0
        %1333 = vmatpush1.msra.mxu0 0.0
        %1334 = vmatprep.subr.mxu0 0.0
        %1335 = vmatpush1.msra.mxu0 0.0
        %1336 = vmatprep.subr.mxu0 0.0
        %1337 = vmatpush1.msra.mxu0 0.0
        %1338 = vmatprep.subr.mxu0 0.0
        %1339 = vmatpush1.msra.mxu0 0.0
        %1340 = vmatprep.subr.mxu0 0.0
        %1341 = vmatpush1.msra.mxu0 0.0
        %1342 = vmatprep.subr.mxu0 0.0
        %1343 = vmatpush1.msra.mxu0 0.0
        %1344 = vmatprep.subr.mxu0 0.0
        %1345 = vmatpush1.msra.mxu0 0.0
        %1346 = vmatprep.subr.mxu0 0.0
        %1347 = vmatpush1.msra.mxu0 0.0
        %1348 = vmatprep.subr.mxu0 0.0
        %1349 = vmatpush1.msra.mxu0 0.0
        %1350 = vmatprep.subr.mxu0 0.0
        %1351 = vmatpush1.msra.mxu0 0.0
        %1352 = vmatprep.subr.mxu0 0.0
        %1353 = vmatpush1.msra.mxu0 0.0
        %1354 = vmatprep.subr.mxu0 0.0
        %1355 = vmatpush1.msra.mxu0 0.0
        %1356 = vmatprep.subr.mxu0 0.0
        %1357 = vmatpush1.msra.mxu0 0.0
        %1358 = vmatprep.subr.mxu0 0.0
        %1359 = vmatpush1.msra.mxu0 0.0
        %1360 = vmatprep.subr.mxu0 0.0
        %1361 = vmatpush1.msra.mxu0 0.0
        %1362 = vmatprep.subr.mxu0 0.0
        %1363 = vmatpush1.msra.mxu0 0.0
        %1364 = vmatprep.subr.mxu0 0.0
        %1365 = vmatpush1.msra.mxu0 0.0
        %1366 = vmatprep.subr.mxu0 0.0
        %1367 = vmatpush1.msra.mxu0 0.0
        %1368 = vmatprep.subr.mxu0 0.0
        %1369 = vmatpush1.msra.mxu0 0.0
        %1370 = vmatprep.subr.mxu0 0.0
        %1371 = vmatpush1.msra.mxu0 0.0
        %1372 = vmatprep.subr.mxu0 0.0
        %1373 = vmatpush1.msra.mxu0 0.0
        %1374 = vmatprep.subr.mxu0 0.0
        %1375 = vmatpush1.msra.mxu0 0.0
        %1376 = vmatprep.subr.mxu0 0.0
        %1377 = vmatpush1.msra.mxu0 0.0
        %1378 = vmatprep.mubr.f32.mxu0 0.0
        %1379 = vmatmul.mubr.f32.gmra.mrb[0].mxu0 %v1309
        %v1380 = vpop.f32.mrb[0].mxu0
        %v1381 = vadd.f32 0.0, %v1380
        %v1382 = vpop.f32.mrb[0].mxu0
        %1383 = vdwg.mxu0
        %v1385 = vrot.slane %v1381, 1
        %1386 = vrot.lane.b32.xlu0 %v1385, 100
        %v1387 = vpop.permute.xlu0 %1386
        %v1389 = vsel %vm1220, %v1381, %v1387
        %v1390 = vpack.c.bf16 %v1389, %v1389
        %v1391 = vpack.c.bf16 %v1387, %v1387
        %v1392 = vld [vmem:[%s10] sm:$0xff]
        %v1393 = vld [vmem:[%s10 + $0x8] sm:$0xff]
        %v1394 = vld [vmem:[%s10 + $0x10] sm:$0xff]
        %v1395 = vld [vmem:[%s10 + $0x18] sm:$0xff]
        %v1396 = vld [vmem:[%s10 + $0x20] sm:$0xff]
        %v1397 = vld [vmem:[%s10 + $0x28] sm:$0xff]
        %v1398 = vld [vmem:[%s10 + $0x30] sm:$0xff]
        %v1399 = vld [vmem:[%s10 + $0x38] sm:$0xff]
        %v1400 = vld [vmem:[%s10 + $0x40] sm:$0xff]
        %v1401 = vld [vmem:[%s10 + $0x48] sm:$0xff]
        %v1402 = vld [vmem:[%s10 + $0x50] sm:$0xff]
        %v1403 = vld [vmem:[%s10 + $0x58] sm:$0xff]
        %v1404 = vld [vmem:[%s10 + $0x60] sm:$0xff]
        %v1405 = vld [vmem:[%s10 + $0x68] sm:$0xff]
        %v1406 = vld [vmem:[%s10 + $0x70] sm:$0xff]
        %v1407 = vld [vmem:[%s10 + $0x78] sm:$0xff]
        %v1408 = vld [vmem:[%s10 + $0x80] sm:$0xff]
        %v1409 = vld [vmem:[%s10 + $0x88] sm:$0xff]
        %v1410 = vld [vmem:[%s10 + $0x90] sm:$0xff]
        %v1411 = vld [vmem:[%s10 + $0x98] sm:$0xff]
        %v1412 = vld [vmem:[%s10 + $0xa0] sm:$0xff]
        %v1413 = vld [vmem:[%s10 + $0xa8] sm:$0xff]
        %v1414 = vld [vmem:[%s10 + $0xb0] sm:$0xff]
        %v1415 = vld [vmem:[%s10 + $0xb8] sm:$0xff]
        %v1416 = vld [vmem:[%s10 + $0xc0] sm:$0xff]
        %v1442 = vunpack.c.l.b16 %v1392
        %v1443 = vunpack.c.h.b16 %v1392
        %v1444 = vunpack.c.l.b16 %v1393
        %v1445 = vunpack.c.h.b16 %v1393
        %v1446 = vunpack.c.l.b16 %v1394
        %v1447 = vunpack.c.h.b16 %v1394
        %v1448 = vunpack.c.l.b16 %v1395
        %v1449 = vunpack.c.h.b16 %v1395
        %v1450 = vunpack.c.l.b16 %v1396
        %v1451 = vunpack.c.h.b16 %v1396
        %v1452 = vunpack.c.l.b16 %v1397
        %v1453 = vunpack.c.h.b16 %v1397
        %v1454 = vunpack.c.l.b16 %v1398
        %v1455 = vunpack.c.h.b16 %v1398
        %v1456 = vunpack.c.l.b16 %v1399
        %v1457 = vunpack.c.h.b16 %v1399
        %v1458 = vunpack.c.l.b16 %v1400
        %v1459 = vunpack.c.h.b16 %v1400
        %v1460 = vunpack.c.l.b16 %v1401
        %v1461 = vunpack.c.h.b16 %v1401
        %v1462 = vunpack.c.l.b16 %v1402
        %v1463 = vunpack.c.h.b16 %v1402
        %v1464 = vunpack.c.l.b16 %v1403
        %v1465 = vunpack.c.h.b16 %v1403
        %v1466 = vunpack.c.l.b16 %v1404
        %v1467 = vunpack.c.h.b16 %v1404
        %v1468 = vunpack.c.l.b16 %v1405
        %v1469 = vunpack.c.h.b16 %v1405
        %v1470 = vunpack.c.l.b16 %v1406
        %v1471 = vunpack.c.h.b16 %v1406
        %v1472 = vunpack.c.l.b16 %v1407
        %v1473 = vunpack.c.h.b16 %v1407
        %v1474 = vunpack.c.l.b16 %v1408
        %v1475 = vunpack.c.h.b16 %v1408
        %v1476 = vunpack.c.l.b16 %v1409
        %v1477 = vunpack.c.h.b16 %v1409
        %v1478 = vunpack.c.l.b16 %v1410
        %v1479 = vunpack.c.h.b16 %v1410
        %v1480 = vunpack.c.l.b16 %v1411
        %v1481 = vunpack.c.h.b16 %v1411
        %v1482 = vunpack.c.l.b16 %v1412
        %v1483 = vunpack.c.h.b16 %v1412
        %v1484 = vunpack.c.l.b16 %v1413
        %v1485 = vunpack.c.h.b16 %v1413
        %v1486 = vunpack.c.l.b16 %v1414
        %v1487 = vunpack.c.h.b16 %v1414
        %v1488 = vunpack.c.l.b16 %v1415
        %v1489 = vunpack.c.h.b16 %v1415
        %v1490 = vunpack.c.l.b16 %v1416
        %v1491 = vunpack.c.h.b16 %v1416
        %v1492 = vpack.c.b16 %v1444, %v1442
        %v1493 = vpack.c.b16 %v1445, %v1443
        %v1494 = vpack.c.b16 %v1448, %v1446
        %v1495 = vpack.c.b16 %v1449, %v1447
        %v1496 = vpack.c.b16 %v1452, %v1450
        %v1497 = vpack.c.b16 %v1453, %v1451
        %v1498 = vpack.c.b16 %v1456, %v1454
        %v1499 = vpack.c.b16 %v1457, %v1455
        %v1500 = vpack.c.b16 %v1460, %v1458
        %v1501 = vpack.c.b16 %v1461, %v1459
        %v1502 = vpack.c.b16 %v1464, %v1462
        %v1503 = vpack.c.b16 %v1465, %v1463
        %v1504 = vpack.c.b16 %v1468, %v1466
        %v1505 = vpack.c.b16 %v1469, %v1467
        %v1506 = vpack.c.b16 %v1472, %v1470
        %v1507 = vpack.c.b16 %v1473, %v1471
        %v1508 = vpack.c.b16 %v1476, %v1474
        %v1509 = vpack.c.b16 %v1477, %v1475
        %v1510 = vpack.c.b16 %v1480, %v1478
        %v1511 = vpack.c.b16 %v1481, %v1479
        %v1512 = vpack.c.b16 %v1484, %v1482
        %v1513 = vpack.c.b16 %v1485, %v1483
        %v1514 = vpack.c.b16 %v1488, %v1486
        %v1515 = vpack.c.b16 %v1489, %v1487
        %v1516 = vpack.c.b16 %v1490, %v1490
        %v1517 = vpack.c.b16 %v1491, %v1491
        %vm1542 = vcmask 588800
        %v1544 = vsel %vm1542, %v1391, 0
        %v1547 = vsel %vm576, %v1516, 0
        %v1550 = vsel %vm576, %v1517, 0
        %1552 = vmatprep.subr.bf16.mxu0 %v1493
        %1553 = vmatpush1.bf16.msra.mxu0 %v1492
        %1554 = vmatprep.subr.bf16.mxu0 %v1495
        %1555 = vmatpush1.bf16.msra.mxu0 %v1494
        %1556 = vmatprep.subr.bf16.mxu0 %v1497
        %1557 = vmatpush1.bf16.msra.mxu0 %v1496
        %1558 = vmatprep.subr.bf16.mxu0 %v1499
        %1559 = vmatpush1.bf16.msra.mxu0 %v1498
        %1560 = vmatprep.subr.bf16.mxu0 %v1501
        %1561 = vmatpush1.bf16.msra.mxu0 %v1500
        %1562 = vmatprep.subr.bf16.mxu0 %v1503
        %1563 = vmatpush1.bf16.msra.mxu0 %v1502
        %1564 = vmatprep.subr.bf16.mxu0 %v1505
        %1565 = vmatpush1.bf16.msra.mxu0 %v1504
        %1566 = vmatprep.subr.bf16.mxu0 %v1507
        %1567 = vmatpush1.bf16.msra.mxu0 %v1506
        %1568 = vmatprep.subr.bf16.mxu0 %v1509
        %1569 = vmatpush1.bf16.msra.mxu0 %v1508
        %1570 = vmatprep.subr.bf16.mxu0 %v1511
        %1571 = vmatpush1.bf16.msra.mxu0 %v1510
        %1572 = vmatprep.subr.bf16.mxu0 %v1513
        %1573 = vmatpush1.bf16.msra.mxu0 %v1512
        %1574 = vmatprep.subr.bf16.mxu0 %v1515
        %1575 = vmatpush1.bf16.msra.mxu0 %v1514
        %1576 = vmatprep.subr.bf16.mxu0 %v1550
        %1577 = vmatpush1.bf16.msra.mxu0 %v1547
        %1578 = vmatprep.subr.bf16.mxu0 0
        %1579 = vmatpush1.bf16.msra.mxu0 0
        %1580 = vmatprep.subr.bf16.mxu0 0
        %1581 = vmatpush1.bf16.msra.mxu0 0
        %1582 = vmatprep.subr.bf16.mxu0 0
        %1583 = vmatpush1.bf16.msra.mxu0 0
        %1584 = vmatprep.mubr.bf16.mxu0 %v1544
        %1585 = vmatmul.mubr.bf16.gmra.mrb[0].mxu0 %v1390
        %v1586 = vpop.f32.mrb[0].mxu0
        %v1587 = vadd.f32 0.0, %v1586
        %v1588 = vpop.f32.mrb[0].mxu0
        %v1589 = vadd.f32 0.0, %v1588
        %v1590 = vpop.f32.mrb[0].mxu0
        %v1591 = vpop.f32.mrb[0].mxu0
        %1592 = vdwg.mxu0
        %v1593 = vld [vmem:[%s11] sm:$0x3]
        %v1595 = vlaneseq
        %v1596 = vshrl.u32 %v1595, 7
        %v1597 = vsub.s32 0, %v1596
        %v1598 = vrot.slane %v1593, %v1597
        %v1599 = vlaneseq
        %v1600 = vshrl.u32 %v1599, 7
        %v1601 = vsub.s32 1, %v1600
        %v1602 = vrot.slane %v1593, %v1601
        %v1605 = vmul.f32 %v1587, %v1598
        %v1606 = vmul.f32 %v1589, %v1602
        %v1607 = vld [vmem:[%s12] sm:$0x3]
        %v1609 = vlaneseq
        %v1610 = vshrl.u32 %v1609, 7
        %v1611 = vsub.s32 0, %v1610
        %v1612 = vrot.slane %v1607, %v1611
        %v1613 = vlaneseq
        %v1614 = vshrl.u32 %v1613, 7
        %v1615 = vsub.s32 1, %v1614
        %v1616 = vrot.slane %v1607, %v1615
        %v1619 = vadd.f32 %v1605, %v1612
        %v1620 = vadd.f32 %v1606, %v1616
        %vm1621 = vcmp.gt.f32.partialorder %v1619, 0.0
        %vm1622 = vcmp.gt.f32.partialorder %v1620, 0.0
        %v1623 = vmin.f32 %v1619, 0.0
        %v1624 = vmin.f32 %v1620, 0.0
        %v1625 = vmul.f32 %v1623, 1.442695
        %v1626 = vpow.pop %v1625
        %v1627 = vmul.f32 %v1624, 1.442695
        %v1628 = vpow.pop %v1627
        %v1629 = vsub.f32 %v1626, 1.0
        %v1630 = vsub.f32 %v1628, 1.0
        %v1631 = vsel %vm1621, %v1619, %v1629
        %v1632 = vsel %vm1622, %v1620, %v1630
        %v1635 = vrot.slane %v1631, 1
        %v1636 = vrot.slane %v1632, 1
        %v1639 = vmax.f32 %v1631, %v1635
        %v1640 = vmax.f32 %v1632, %v1636
        %vm1641 = vcmask 39936
        %v1642 = vsel %vm1641, %v781, 0
        %v1645 = vsel %vm1075, %v1639, 0
        %v1648 = vsel %vm1075, %v1640, 0
        %1650 = vmatprep.subr.mxu0 %v1648
        %1651 = vmatpush1.msra.mxu0 %v1645
        %1652 = vmatprep.subr.mxu0 0.0
        %1653 = vmatpush1.msra.mxu0 0.0
        %1654 = vmatprep.subr.mxu0 0.0
        %1655 = vmatpush1.msra.mxu0 0.0
        %1656 = vmatprep.subr.mxu0 0.0
        %1657 = vmatpush1.msra.mxu0 0.0
        %1658 = vmatprep.subr.mxu0 0.0
        %1659 = vmatpush1.msra.mxu0 0.0
        %1660 = vmatprep.subr.mxu0 0.0
        %1661 = vmatpush1.msra.mxu0 0.0
        %1662 = vmatprep.subr.mxu0 0.0
        %1663 = vmatpush1.msra.mxu0 0.0
        %1664 = vmatprep.subr.mxu0 0.0
        %1665 = vmatpush1.msra.mxu0 0.0
        %1666 = vmatprep.subr.mxu0 0.0
        %1667 = vmatpush1.msra.mxu0 0.0
        %1668 = vmatprep.subr.mxu0 0.0
        %1669 = vmatpush1.msra.mxu0 0.0
        %1670 = vmatprep.subr.mxu0 0.0
        %1671 = vmatpush1.msra.mxu0 0.0
        %1672 = vmatprep.subr.mxu0 0.0
        %1673 = vmatpush1.msra.mxu0 0.0
        %1674 = vmatprep.subr.mxu0 0.0
        %1675 = vmatpush1.msra.mxu0 0.0
        %1676 = vmatprep.subr.mxu0 0.0
        %1677 = vmatpush1.msra.mxu0 0.0
        %1678 = vmatprep.subr.mxu0 0.0
        %1679 = vmatpush1.msra.mxu0 0.0
        %1680 = vmatprep.subr.mxu0 0.0
        %1681 = vmatpush1.msra.mxu0 0.0
        %1682 = vmatprep.subr.mxu0 0.0
        %1683 = vmatpush1.msra.mxu0 0.0
        %1684 = vmatprep.subr.mxu0 0.0
        %1685 = vmatpush1.msra.mxu0 0.0
        %1686 = vmatprep.subr.mxu0 0.0
        %1687 = vmatpush1.msra.mxu0 0.0
        %1688 = vmatprep.subr.mxu0 0.0
        %1689 = vmatpush1.msra.mxu0 0.0
        %1690 = vmatprep.subr.mxu0 0.0
        %1691 = vmatpush1.msra.mxu0 0.0
        %1692 = vmatprep.subr.mxu0 0.0
        %1693 = vmatpush1.msra.mxu0 0.0
        %1694 = vmatprep.subr.mxu0 0.0
        %1695 = vmatpush1.msra.mxu0 0.0
        %1696 = vmatprep.subr.mxu0 0.0
        %1697 = vmatpush1.msra.mxu0 0.0
        %1698 = vmatprep.subr.mxu0 0.0
        %1699 = vmatpush1.msra.mxu0 0.0
        %1700 = vmatprep.subr.mxu0 0.0
        %1701 = vmatpush1.msra.mxu0 0.0
        %1702 = vmatprep.subr.mxu0 0.0
        %1703 = vmatpush1.msra.mxu0 0.0
        %1704 = vmatprep.subr.mxu0 0.0
        %1705 = vmatpush1.msra.mxu0 0.0
        %1706 = vmatprep.subr.mxu0 0.0
        %1707 = vmatpush1.msra.mxu0 0.0
        %1708 = vmatprep.subr.mxu0 0.0
        %1709 = vmatpush1.msra.mxu0 0.0
        %1710 = vmatprep.subr.mxu0 0.0
        %1711 = vmatpush1.msra.mxu0 0.0
        %1712 = vmatprep.subr.mxu0 0.0
        %1713 = vmatpush1.msra.mxu0 0.0
        %1714 = vmatprep.mubr.f32.mxu0 0.0
        %1715 = vmatmul.mubr.f32.gmra.mrb[0].mxu0 %v1642
        %v1716 = vpop.f32.mrb[0].mxu0
        %v1717 = vadd.f32 0.0, %v1716
        %v1718 = vpop.f32.mrb[0].mxu0
        %v1719 = vadd.f32 0.0, %v1718
        %1720 = vdwg.mxu0
        %v1723 = vrot.slane %v1717, 1
        %v1724 = vrot.slane %v1719, 1
        %1725 = vrot.lane.b32.xlu0 %v1723, 72
        %v1726 = vpop.permute.xlu0 %1725
        %1727 = vrot.lane.b32.xlu0 %v1724, 72
        %v1728 = vpop.permute.xlu0 %1727
        %v1729 = vsel %vm1542, %v1726, %v1728
        %v1733 = vrot.slane %v1717, 2
        %v1734 = vrot.slane %v1719, 2
        %1735 = vrot.lane.b32.xlu0 %v1733, 16
        %v1736 = vpop.permute.xlu0 %1735
        %1737 = vrot.lane.b32.xlu0 %v1734, 16
        %v1738 = vpop.permute.xlu0 %1737
        %vm1739 = vcmask 130048
        %v1740 = vsel %vm1739, %v1736, %v1738
        %v1743 = vsel %vm1542, %v1719, %v1726
        %v1744 = vsel %vm1739, %v1728, %v1736
        %v1745 = vpack.c.bf16 %v1717, %v1717
        %v1746 = vpack.c.bf16 %v1743, %v1743
        %v1747 = vpack.c.bf16 %v1729, %v1729
        %v1748 = vpack.c.bf16 %v1744, %v1744
        %v1749 = vpack.c.bf16 %v1740, %v1740
        %v1750 = vld [vmem:[%s13] sm:$0xf]
        %v1751 = vld [vmem:[%s13 + $0x4] sm:$0xf]
        %v1752 = vld [vmem:[%s13 + $0x8] sm:$0xf]
        %v1753 = vld [vmem:[%s13 + $0xc] sm:$0xf]
        %v1754 = vld [vmem:[%s13 + $0x10] sm:$0xf]
        %v1755 = vld [vmem:[%s13 + $0x14] sm:$0xf]
        %v1756 = vld [vmem:[%s13 + $0x18] sm:$0xf]
        %v1757 = vld [vmem:[%s13 + $0x1c] sm:$0xf]
        %v1758 = vld [vmem:[%s13 + $0x20] sm:$0xf]
        %v1759 = vld [vmem:[%s13 + $0x24] sm:$0xf]
        %v1760 = vld [vmem:[%s13 + $0x28] sm:$0xf]
        %v1761 = vld [vmem:[%s13 + $0x2c] sm:$0xf]
        %v1762 = vld [vmem:[%s13 + $0x30] sm:$0xf]
        %v1763 = vld [vmem:[%s13 + $0x34] sm:$0xf]
        %v1764 = vld [vmem:[%s13 + $0x38] sm:$0xf]
        %v1765 = vld [vmem:[%s13 + $0x3c] sm:$0xf]
        %v1766 = vld [vmem:[%s13 + $0x40] sm:$0xf]
        %v1767 = vld [vmem:[%s13 + $0x44] sm:$0xf]
        %v1768 = vld [vmem:[%s13 + $0x48] sm:$0xf]
        %v1769 = vld [vmem:[%s13 + $0x4c] sm:$0xf]
        %v1770 = vld [vmem:[%s13 + $0x50] sm:$0xf]
        %v1771 = vld [vmem:[%s13 + $0x54] sm:$0xf]
        %v1772 = vld [vmem:[%s13 + $0x58] sm:$0xf]
        %v1773 = vld [vmem:[%s13 + $0x5c] sm:$0xf]
        %v1774 = vld [vmem:[%s13 + $0x60] sm:$0xf]
        %v1775 = vld [vmem:[%s13 + $0x64] sm:$0xf]
        %v1776 = vld [vmem:[%s13 + $0x68] sm:$0xf]
        %v1777 = vld [vmem:[%s13 + $0x6c] sm:$0xf]
        %v1778 = vld [vmem:[%s13 + $0x70] sm:$0xf]
        %v1779 = vld [vmem:[%s13 + $0x74] sm:$0xf]
        %v1780 = vld [vmem:[%s13 + $0x78] sm:$0xf]
        %v1781 = vld [vmem:[%s13 + $0x7c] sm:$0xf]
        %v1782 = vld [vmem:[%s13 + $0x80] sm:$0xf]
        %v1783 = vld [vmem:[%s13 + $0x84] sm:$0xf]
        %v1784 = vld [vmem:[%s13 + $0x88] sm:$0xf]
        %v1785 = vld [vmem:[%s13 + $0x8c] sm:$0xf]
        %v1786 = vld [vmem:[%s13 + $0x90] sm:$0xf]
        %v1787 = vld [vmem:[%s13 + $0x94] sm:$0xf]
        %v1788 = vld [vmem:[%s13 + $0x98] sm:$0xf]
        %v1789 = vld [vmem:[%s13 + $0x9c] sm:$0xf]
        %v1790 = vld [vmem:[%s13 + $0xa0] sm:$0xf]
        %v1791 = vld [vmem:[%s13 + $0xa4] sm:$0xf]
        %v1792 = vld [vmem:[%s13 + $0xa8] sm:$0xf]
        %v1793 = vld [vmem:[%s13 + $0xac] sm:$0xf]
        %v1794 = vld [vmem:[%s13 + $0xb0] sm:$0xf]
        %v1795 = vld [vmem:[%s13 + $0xb4] sm:$0xf]
        %v1796 = vld [vmem:[%s13 + $0xb8] sm:$0xf]
        %v1797 = vld [vmem:[%s13 + $0xbc] sm:$0xf]
        %v1798 = vld [vmem:[%s13 + $0xc0] sm:$0xf]
        %v1799 = vld [vmem:[%s13 + $0xc4] sm:$0xf]
        %v1800 = vld [vmem:[%s13 + $0xc8] sm:$0xf]
        %v1801 = vld [vmem:[%s13 + $0xcc] sm:$0xf]
        %v1802 = vld [vmem:[%s13 + $0xd0] sm:$0xf]
        %v1803 = vld [vmem:[%s13 + $0xd4] sm:$0xf]
        %v1804 = vld [vmem:[%s13 + $0xd8] sm:$0xf]
        %v1805 = vld [vmem:[%s13 + $0xdc] sm:$0xf]
        %v1806 = vld [vmem:[%s13 + $0xe0] sm:$0xf]
        %v1807 = vld [vmem:[%s13 + $0xe4] sm:$0xf]
        %v1808 = vld [vmem:[%s13 + $0xe8] sm:$0xf]
        %v1809 = vld [vmem:[%s13 + $0xec] sm:$0xf]
        %v1810 = vld [vmem:[%s13 + $0xf0] sm:$0xf]
        %v1811 = vld [vmem:[%s13 + $0xf4] sm:$0xf]
        %v1812 = vld [vmem:[%s13 + $0xf8] sm:$0xf]
        %v1813 = vld [vmem:[%s13 + $0xfc] sm:$0xf]
        %v1814 = vld [vmem:[%s13 + $0x100] sm:$0xf]
        %v1815 = vld [vmem:[%s13 + $0x104] sm:$0xf]
        %v1816 = vld [vmem:[%s13 + $0x108] sm:$0xf]
        %v1817 = vld [vmem:[%s13 + $0x10c] sm:$0xf]
        %v1818 = vld [vmem:[%s13 + $0x110] sm:$0xf]
        %v1819 = vld [vmem:[%s13 + $0x114] sm:$0xf]
        %v1820 = vld [vmem:[%s13 + $0x118] sm:$0xf]
        %v1821 = vld [vmem:[%s13 + $0x11c] sm:$0xf]
        %v1822 = vld [vmem:[%s13 + $0x120] sm:$0xf]
        %v1823 = vld [vmem:[%s13 + $0x124] sm:$0xf]
        %v1824 = vld [vmem:[%s13 + $0x128] sm:$0xf]
        %v1825 = vld [vmem:[%s14] sm:$0x1]
        %v1901 = vunpack.c.l.b16 %v1750
        %v1902 = vunpack.c.l.b16 %v1751
        %v1903 = vunpack.c.l.b16 %v1752
        %v1904 = vunpack.c.l.b16 %v1753
        %v1905 = vunpack.c.l.b16 %v1754
        %v1906 = vunpack.c.l.b16 %v1755
        %v1907 = vunpack.c.l.b16 %v1756
        %v1908 = vunpack.c.l.b16 %v1757
        %v1909 = vunpack.c.l.b16 %v1758
        %v1910 = vunpack.c.l.b16 %v1759
        %v1911 = vunpack.c.l.b16 %v1760
        %v1912 = vunpack.c.l.b16 %v1761
        %v1913 = vunpack.c.l.b16 %v1762
        %v1914 = vunpack.c.l.b16 %v1763
        %v1915 = vunpack.c.l.b16 %v1764
        %v1916 = vunpack.c.l.b16 %v1765
        %v1917 = vunpack.c.l.b16 %v1766
        %v1918 = vunpack.c.l.b16 %v1767
        %v1919 = vunpack.c.l.b16 %v1768
        %v1920 = vunpack.c.l.b16 %v1769
        %v1921 = vunpack.c.l.b16 %v1770
        %v1922 = vunpack.c.l.b16 %v1771
        %v1923 = vunpack.c.l.b16 %v1772
        %v1924 = vunpack.c.l.b16 %v1773
        %v1925 = vunpack.c.l.b16 %v1774
        %v1926 = vunpack.c.l.b16 %v1775
        %v1927 = vunpack.c.l.b16 %v1776
        %v1928 = vunpack.c.l.b16 %v1777
        %v1929 = vunpack.c.l.b16 %v1778
        %v1930 = vunpack.c.l.b16 %v1779
        %v1931 = vunpack.c.l.b16 %v1780
        %v1932 = vunpack.c.l.b16 %v1781
        %v1933 = vunpack.c.l.b16 %v1782
        %v1934 = vunpack.c.l.b16 %v1783
        %v1935 = vunpack.c.l.b16 %v1784
        %v1936 = vunpack.c.l.b16 %v1785
        %v1937 = vunpack.c.l.b16 %v1786
        %v1938 = vunpack.c.l.b16 %v1787
        %v1939 = vunpack.c.l.b16 %v1788
        %v1940 = vunpack.c.l.b16 %v1789
        %v1941 = vunpack.c.l.b16 %v1790
        %v1942 = vunpack.c.l.b16 %v1791
        %v1943 = vunpack.c.l.b16 %v1792
        %v1944 = vunpack.c.l.b16 %v1793
        %v1945 = vunpack.c.l.b16 %v1794
        %v1946 = vunpack.c.l.b16 %v1795
        %v1947 = vunpack.c.l.b16 %v1796
        %v1948 = vunpack.c.l.b16 %v1797
        %v1949 = vunpack.c.l.b16 %v1798
        %v1950 = vunpack.c.l.b16 %v1799
        %v1951 = vunpack.c.l.b16 %v1800
        %v1952 = vunpack.c.l.b16 %v1801
        %v1953 = vunpack.c.l.b16 %v1802
        %v1954 = vunpack.c.l.b16 %v1803
        %v1955 = vunpack.c.l.b16 %v1804
        %v1956 = vunpack.c.l.b16 %v1805
        %v1957 = vunpack.c.l.b16 %v1806
        %v1958 = vunpack.c.l.b16 %v1807
        %v1959 = vunpack.c.l.b16 %v1808
        %v1960 = vunpack.c.l.b16 %v1809
        %v1961 = vunpack.c.l.b16 %v1810
        %v1962 = vunpack.c.l.b16 %v1811
        %v1963 = vunpack.c.l.b16 %v1812
        %v1964 = vunpack.c.l.b16 %v1813
        %v1965 = vunpack.c.l.b16 %v1814
        %v1966 = vunpack.c.l.b16 %v1815
        %v1967 = vunpack.c.l.b16 %v1816
        %v1968 = vunpack.c.l.b16 %v1817
        %v1969 = vunpack.c.l.b16 %v1818
        %v1970 = vunpack.c.l.b16 %v1819
        %v1971 = vunpack.c.l.b16 %v1820
        %v1972 = vunpack.c.l.b16 %v1821
        %v1973 = vunpack.c.l.b16 %v1822
        %v1974 = vunpack.c.l.b16 %v1823
        %v1975 = vunpack.c.l.b16 %v1824
        %v1976 = vpack.c.b16 %v1902, %v1901
        %v1977 = vpack.c.b16 %v1904, %v1903
        %v1978 = vpack.c.b16 %v1906, %v1905
        %v1979 = vpack.c.b16 %v1908, %v1907
        %v1980 = vpack.c.b16 %v1910, %v1909
        %v1981 = vpack.c.b16 %v1912, %v1911
        %v1982 = vpack.c.b16 %v1914, %v1913
        %v1983 = vpack.c.b16 %v1916, %v1915
        %v1984 = vpack.c.b16 %v1918, %v1917
        %v1985 = vpack.c.b16 %v1920, %v1919
        %v1986 = vpack.c.b16 %v1922, %v1921
        %v1987 = vpack.c.b16 %v1924, %v1923
        %v1988 = vpack.c.b16 %v1926, %v1925
        %v1989 = vpack.c.b16 %v1928, %v1927
        %v1990 = vpack.c.b16 %v1930, %v1929
        %v1991 = vpack.c.b16 %v1932, %v1931
        %v1992 = vpack.c.b16 %v1934, %v1933
        %v1993 = vpack.c.b16 %v1936, %v1935
        %v1994 = vpack.c.b16 %v1938, %v1937
        %v1995 = vpack.c.b16 %v1940, %v1939
        %v1996 = vpack.c.b16 %v1942, %v1941
        %v1997 = vpack.c.b16 %v1944, %v1943
        %v1998 = vpack.c.b16 %v1946, %v1945
        %v1999 = vpack.c.b16 %v1948, %v1947
        %v2000 = vpack.c.b16 %v1950, %v1949
        %v2001 = vpack.c.b16 %v1952, %v1951
        %v2002 = vpack.c.b16 %v1954, %v1953
        %v2003 = vpack.c.b16 %v1956, %v1955
        %v2004 = vpack.c.b16 %v1958, %v1957
        %v2005 = vpack.c.b16 %v1960, %v1959
        %v2006 = vpack.c.b16 %v1962, %v1961
        %v2007 = vpack.c.b16 %v1964, %v1963
        %v2008 = vpack.c.b16 %v1966, %v1965
        %v2009 = vpack.c.b16 %v1968, %v1967
        %v2010 = vpack.c.b16 %v1970, %v1969
        %v2011 = vpack.c.b16 %v1972, %v1971
        %v2012 = vpack.c.b16 %v1974, %v1973
        %v2013 = vpack.c.b16 %v1975, %v1975
        %vm2051 = vcmask 719872
        %v2053 = vsel %vm2051, %v1749, 0
        %v2056 = vsel %vm576, %v2013, 0
        %2058 = vmatprep.subr.bf16.mxu0 0
        %2059 = vmatpush1.bf16.msra.mxu0 %v1976
        %2060 = vmatprep.subr.bf16.mxu0 0
        %2061 = vmatpush1.bf16.msra.mxu0 %v1977
        %2062 = vmatprep.subr.bf16.mxu0 0
        %2063 = vmatpush1.bf16.msra.mxu0 %v1978
        %2064 = vmatprep.subr.bf16.mxu0 0
        %2065 = vmatpush1.bf16.msra.mxu0 %v1979
        %2066 = vmatprep.subr.bf16.mxu0 0
        %2067 = vmatpush1.bf16.msra.mxu0 %v1980
        %2068 = vmatprep.subr.bf16.mxu0 0
        %2069 = vmatpush1.bf16.msra.mxu0 %v1981
        %2070 = vmatprep.subr.bf16.mxu0 0
        %2071 = vmatpush1.bf16.msra.mxu0 %v1982
        %2072 = vmatprep.subr.bf16.mxu0 0
        %2073 = vmatpush1.bf16.msra.mxu0 %v1983
        %2074 = vmatprep.subr.bf16.mxu0 0
        %2075 = vmatpush1.bf16.msra.mxu0 %v1984
        %2076 = vmatprep.subr.bf16.mxu0 0
        %2077 = vmatpush1.bf16.msra.mxu0 %v1985
        %2078 = vmatprep.subr.bf16.mxu0 0
        %2079 = vmatpush1.bf16.msra.mxu0 %v1986
        %2080 = vmatprep.subr.bf16.mxu0 0
        %2081 = vmatpush1.bf16.msra.mxu0 %v1987
        %2082 = vmatprep.subr.bf16.mxu0 0
        %2083 = vmatpush1.bf16.msra.mxu0 %v1988
        %2084 = vmatprep.subr.bf16.mxu0 0
        %2085 = vmatpush1.bf16.msra.mxu0 %v1989
        %2086 = vmatprep.subr.bf16.mxu0 0
        %2087 = vmatpush1.bf16.msra.mxu0 %v1990
        %2088 = vmatprep.subr.bf16.mxu0 0
        %2089 = vmatpush1.bf16.msra.mxu0 %v1991
        %2090 = vmatprep.mubr.bf16.mxu0 %v1746
        %2091 = vmatmul.mubr.bf16.gmra.mrb[0].mxu0 %v1745
        %v2092 = vpop.f32.mrb[0].mxu0
        %v2093 = vadd.f32 %v1825, %v2092
        %v2094 = vpop.f32.mrb[0].mxu0
        %v2095 = vpop.f32.mrb[0].mxu0
        %v2096 = vpop.f32.mrb[0].mxu0
        %2097 = vdwg.mxu0
        %2098 = vmatprep.subr.bf16.mxu0 0
        %2099 = vmatpush1.bf16.msra.mxu0 %v1992
        %2100 = vmatprep.subr.bf16.mxu0 0
        %2101 = vmatpush1.bf16.msra.mxu0 %v1993
        %2102 = vmatprep.subr.bf16.mxu0 0
        %2103 = vmatpush1.bf16.msra.mxu0 %v1994
        %2104 = vmatprep.subr.bf16.mxu0 0
        %2105 = vmatpush1.bf16.msra.mxu0 %v1995
        %2106 = vmatprep.subr.bf16.mxu0 0
        %2107 = vmatpush1.bf16.msra.mxu0 %v1996
        %2108 = vmatprep.subr.bf16.mxu0 0
        %2109 = vmatpush1.bf16.msra.mxu0 %v1997
        %2110 = vmatprep.subr.bf16.mxu0 0
        %2111 = vmatpush1.bf16.msra.mxu0 %v1998
        %2112 = vmatprep.subr.bf16.mxu0 0
        %2113 = vmatpush1.bf16.msra.mxu0 %v1999
        %2114 = vmatprep.subr.bf16.mxu0 0
        %2115 = vmatpush1.bf16.msra.mxu0 %v2000
        %2116 = vmatprep.subr.bf16.mxu0 0
        %2117 = vmatpush1.bf16.msra.mxu0 %v2001
        %2118 = vmatprep.subr.bf16.mxu0 0
        %2119 = vmatpush1.bf16.msra.mxu0 %v2002
        %2120 = vmatprep.subr.bf16.mxu0 0
        %2121 = vmatpush1.bf16.msra.mxu0 %v2003
        %2122 = vmatprep.subr.bf16.mxu0 0
        %2123 = vmatpush1.bf16.msra.mxu0 %v2004
        %2124 = vmatprep.subr.bf16.mxu0 0
        %2125 = vmatpush1.bf16.msra.mxu0 %v2005
        %2126 = vmatprep.subr.bf16.mxu0 0
        %2127 = vmatpush1.bf16.msra.mxu0 %v2006
        %2128 = vmatprep.subr.bf16.mxu0 0
        %2129 = vmatpush1.bf16.msra.mxu0 %v2007
        %2130 = vmatprep.mubr.bf16.mxu0 %v1748
        %2131 = vmatmul.mubr.bf16.gmra.mrb[0].mxu0 %v1747
        %v2132 = vpop.f32.mrb[0].mxu0
        %v2133 = vadd.f32 %v2093, %v2132
        %v2134 = vpop.f32.mrb[0].mxu0
        %v2135 = vpop.f32.mrb[0].mxu0
        %v2136 = vpop.f32.mrb[0].mxu0
        %2137 = vdwg.mxu0
        %2138 = vmatprep.subr.bf16.mxu0 0
        %2139 = vmatpush1.bf16.msra.mxu0 %v2008
        %2140 = vmatprep.subr.bf16.mxu0 0
        %2141 = vmatpush1.bf16.msra.mxu0 %v2009
        %2142 = vmatprep.subr.bf16.mxu0 0
        %2143 = vmatpush1.bf16.msra.mxu0 %v2010
        %2144 = vmatprep.subr.bf16.mxu0 0
        %2145 = vmatpush1.bf16.msra.mxu0 %v2011
        %2146 = vmatprep.subr.bf16.mxu0 0
        %2147 = vmatpush1.bf16.msra.mxu0 %v2012
        %2148 = vmatprep.subr.bf16.mxu0 0
        %2149 = vmatpush1.bf16.msra.mxu0 %v2056
        %2150 = vmatprep.subr.bf16.mxu0 0
        %2151 = vmatpush1.bf16.msra.mxu0 0
        %2152 = vmatprep.subr.bf16.mxu0 0
        %2153 = vmatpush1.bf16.msra.mxu0 0
        %2154 = vmatprep.subr.bf16.mxu0 0
        %2155 = vmatpush1.bf16.msra.mxu0 0
        %2156 = vmatprep.subr.bf16.mxu0 0
        %2157 = vmatpush1.bf16.msra.mxu0 0
        %2158 = vmatprep.subr.bf16.mxu0 0
        %2159 = vmatpush1.bf16.msra.mxu0 0
        %2160 = vmatprep.subr.bf16.mxu0 0
        %2161 = vmatpush1.bf16.msra.mxu0 0
        %2162 = vmatprep.subr.bf16.mxu0 0
        %2163 = vmatpush1.bf16.msra.mxu0 0
        %2164 = vmatprep.subr.bf16.mxu0 0
        %2165 = vmatpush1.bf16.msra.mxu0 0
        %2166 = vmatprep.subr.bf16.mxu0 0
        %2167 = vmatpush1.bf16.msra.mxu0 0
        %2168 = vmatprep.subr.bf16.mxu0 0
        %2169 = vmatpush1.bf16.msra.mxu0 0
        %2170 = vmatprep.mubr.bf16.mxu0 0
        %2171 = vmatmul.mubr.bf16.gmra.mrb[0].mxu0 %v2053
        %v2172 = vpop.f32.mrb[0].mxu0
        %v2173 = vadd.f32 %v2133, %v2172
        %v2174 = vpop.f32.mrb[0].mxu0
        %v2175 = vpop.f32.mrb[0].mxu0
        %v2176 = vpop.f32.mrb[0].mxu0
        %2177 = vdwg.mxu0
        %vm2178 = vcmask 24576
        %2179 = vst.msk [vmem:[%s486] sm:$0x1] %vm2178, %v2173
        %s2180 = sand.u32 %s357, 1
        %s2181 = scalar_lea.sflag [#allocation3], %s2180
        %s2182 = sand.u32 %s357, 1
        %s2183 = scalar_lea.vmem [#allocation2], %s2182
        // Predicated region
        $region81: #{deepconvnet_forward.1} parent=79 // pred_check
          %p2184 = pneg %p367
        $region82: #{deepconvnet_forward.1} parent=79 // pred_check_branch
          %2186 = sbr.rel (%p2184) target = $region84
        $region83: #{deepconvnet_forward.1} parent=79 // pred_region
          %s2188 = ssub.s32 16, 16
          %2189 = vsyncadd %s2181, %s2188
          %s2190 = smul.addr %s29, 16
          %s2191 = scalar_lea.hbm %s15, %s2190
          %s2193 = sshll.u32 %s2183, 4
          %s2194 = int_to_ptr.vmem [resolvable:$true] %s2193
          %2196 = dma.vmem_to_hbm [thread:$0]  %s2194, 16, %s2191, %s2181
        $region84: #{deepconvnet_forward.1} parent=79 // pred_fallthru
          _
      $region80: #{deepconvnet_forward.1} parent=5 // pred_fallthru
        _
      %p2197 = scmp.le.s32.totalorder 2, %s24
      // Predicated region
      $region85: #{deepconvnet_forward.1} parent=5 // pred_check
        %p2198 = pneg %p2197
      $region86: #{deepconvnet_forward.1} parent=5 // pred_check_branch
        %2200 = sbr.rel (%p2198) target = $region88
      $region87: #{deepconvnet_forward.1} parent=5 // pred_region
        %s2201 = ssub.s32 %s24, 2
        // Predicated region
        $region89: #{deepconvnet_forward.1} parent=87 // pred_check
          %p2202 = pneg %p373
        $region90: #{deepconvnet_forward.1} parent=87 // pred_check_branch
          %2204 = sbr.rel (%p2202) target = $region92
        $region91: #{deepconvnet_forward.1} parent=87 // pred_region
          %s2205 = sand.u32 %s358, 1
          %s2206 = scalar_lea.sflag [#allocation3], %s2205
          %s2207 = sand.u32 %s358, 1
          %s2208 = scalar_lea.vmem [#allocation2], %s2207
          %2209 = dma.done %s2206, 16
        $region92: #{deepconvnet_forward.1} parent=87 // pred_fallthru
          _
      $region88: #{deepconvnet_forward.1} parent=5 // pred_fallthru
        _
    $region6: #{deepconvnet_forward.1} parent=1 // loop_footer
      %s28 = sadd.s32 1, %s24
    $region7: #{deepconvnet_forward.1} parent=1 // loop_footer_branch
      %23 = sbr.rel target = $region3
    $region8: #{deepconvnet_forward.1} parent=1 // loop_exit
      _
    %2210 = vsyncpa [#allocation3], 1
    %s2211 = scalar_lea.sflag [#allocation3], 1
    %2212 = vsyncpa %s2211, 1

</llo_original>
